<compile_context>
chip_gen: v7x
topology: tpu7x:2x2x1
jax: 0.10.0
libtpu: 0.0.40
codegen_flags: <defaults>
</compile_context>

<pallas_src>
import functools

import jax
import jax.numpy as jnp
from jax import lax
from jax.experimental import pallas as pl
from jax.experimental.pallas import tpu as pltpu


def make_rnn_kernel(num_layers: int, seq_len: int, batch_block: int,
                    hidden: int, matmul_dtype):
    """Kernel closure for fixed (num_layers, T, batch_block, H, dtype)."""
    T, BB, H = seq_len, batch_block, hidden

    def kernel(*refs):
        # refs = [x, (w_ih, w_hh, b) * L, fc_w, fc_b, out, hseq_scratch]
        x_ref = refs[0]
        layer_refs = [refs[1 + 3 * l: 4 + 3 * l] for l in range(num_layers)]
        fc_w_ref = refs[1 + 3 * num_layers]
        fc_b_ref = refs[2 + 3 * num_layers]
        out_ref = refs[3 + 3 * num_layers]
        hseq_ref = refs[4 + 3 * num_layers]          # VMEM (T, BB, H) f32

        h = jnp.zeros((BB, H), jnp.float32)          # PyTorch default h0 = 0
        for l in range(num_layers):
            w_ih_ref, w_hh_ref, b_ref = layer_refs[l]
            w_ih = w_ih_ref[...].astype(matmul_dtype)
            w_hh = w_hh_ref[...].astype(matmul_dtype)
            b = b_ref[...]                           # (1, H), pre-summed, f32

            # Whole-sequence input projection in ONE batched matmul (+ fused
            # bias), hoisted off the serial recurrence. BB is a multiple of 8
            # so the (T, BB, .) <-> (T*BB, .) reshapes are tile-preserving.
            inp3 = x_ref[...] if l == 0 else hseq_ref[...]       # (T, BB, Din/H)
            inp2 = inp3.reshape(T * BB, inp3.shape[-1]).astype(matmul_dtype)
            proj = jnp.dot(inp2, w_ih,
                           preferred_element_type=jnp.float32) + b  # (T*BB, H)
            hseq_ref[...] = proj.reshape(T, BB, H)

            store_seq = (l + 1 < num_layers)   # last layer's seq is never read

            def step(t, h, w_hh=w_hh, store_seq=store_seq):
                # Read proj at slot t, then overwrite slot t with the new hidden
                # state (read happens before the write -> single scratch is safe).
                pre = hseq_ref[t] + jnp.dot(h.astype(matmul_dtype), w_hh,
                                            preferred_element_type=jnp.float32)
                h = jnp.tanh(pre)                    # f32 carry / f32 tanh
                if store_seq:
                    hseq_ref[t] = h
                return h

            h = lax.fori_loop(0, T, step, jnp.zeros((BB, H), jnp.float32),
                              unroll=min(T, 8))

        # out[:, -1, :] of the top layer == h after the last step. FC padded to
        # 128 output lanes and BB>=8 rows -> unmasked full-tile store.
        out_ref[...] = (jnp.dot(h.astype(matmul_dtype),
                                fc_w_ref[...].astype(matmul_dtype),
                                preferred_element_type=jnp.float32)
                        + fc_b_ref[...]).astype(out_ref.dtype)

    return kernel


def rnn_forward(x, params, *, num_layers, matmul_dtype=jnp.float32):
    """x: [B, T, D_in]. params: dict with PyTorch-convention shapes."""
    B, T, D_in = x.shape
    H = params["w_hh_0"].shape[0]
    O = params["fc_w"].shape[0]
    O_PAD = 128

    # Batch padding / blocking: pad B up to a full sublane tile (>=8); for big
    # batches use 128-row blocks so each recurrent matmul fills the MXU rows.
    B_pad = max(8, -(-B // 8) * 8)
    if B_pad > 128:
        B_pad = -(-B_pad // 128) * 128
        BB = 128
    else:
        BB = B_pad
    n_bblk = B_pad // BB

    # Glue (pure layout plumbing):
    #  - x time-major (T, B_pad, D); padded batch rows are garbage, sliced off
    #  - weights pre-transposed to (in_features, out_features)
    #  - b_ih + b_hh folded into a single (1, H) bias per layer
    #  - FC weight/bias zero-padded to 128 output lanes
    x_t = jnp.transpose(x, (1, 0, 2))
    x_t = jnp.pad(x_t, ((0, 0), (0, B_pad - B), (0, 0))).astype(jnp.float32)

    flat = []
    for l in range(num_layers):
        flat.append(params[f"w_ih_{l}"].T.astype(jnp.float32))          # (D, H)
        flat.append(params[f"w_hh_{l}"].T.astype(jnp.float32))          # (H, H)
        flat.append((params[f"b_ih_{l}"] + params[f"b_hh_{l}"])
                    .reshape(1, -1).astype(jnp.float32))                # (1, H)
    fc_w = jnp.zeros((H, O_PAD), jnp.float32).at[:, :O].set(params["fc_w"].T)
    fc_b = jnp.zeros((1, O_PAD), jnp.float32).at[:, :O].set(params["fc_b"])
    flat += [fc_w, fc_b]

    # Block x / out over the batch-block grid; weights are whole-array resident.
    in_specs = [pl.BlockSpec((T, BB, D_in), lambda i: (0, i, 0))]
    for a in flat:
        in_specs.append(pl.BlockSpec(a.shape, lambda i, nd=a.ndim: (0,) * nd))
    out_spec = pl.BlockSpec((BB, O_PAD), lambda i: (i, 0))

    scratch = [pltpu.VMEM((T, BB, H), jnp.float32)]

    # Explicit VMEM budget from actual buffer sizes (with double-buffer + slack)
    # instead of the scoped default (16/32 MiB).
    per_iter_bytes = (2 * T * BB * D_in * 4
                      + 2 * sum(int(a.size) * 4 for a in flat)
                      + T * BB * H * 4
                      + 2 * BB * O_PAD * 4)
    vmem_limit = int(min(max(4 * per_iter_bytes, 4 << 20), 100 << 20))

    kernel = make_rnn_kernel(num_layers, T, BB, H, matmul_dtype)
    out_padded = pl.pallas_call(
        kernel,
        out_shape=jax.ShapeDtypeStruct((B_pad, O_PAD), jnp.float32),
        grid_spec=pltpu.PrefetchScalarGridSpec(
            num_scalar_prefetch=0,
            grid=(n_bblk,),
            in_specs=in_specs,
            out_specs=out_spec,
            scratch_shapes=scratch),
        compiler_params=pltpu.CompilerParams(
            dimension_semantics=("parallel",),   # batch blocks -> v7x 2 TCs
            vmem_limit_bytes=vmem_limit),
    )(x_t, *flat)
    return out_padded[:B, :O]


def rnn_reference(x, params, *, num_layers):
    """Pure-JAX reference with identical semantics (for validation)."""
    B, T, _ = x.shape
    H = params["w_hh_0"].shape[0]
    hs = [jnp.zeros((B, H), jnp.float32) for _ in range(num_layers)]
    for t in range(T):
        inp = x[:, t, :]
        for l in range(num_layers):
            pre = (inp @ params[f"w_ih_{l}"].T + params[f"b_ih_{l}"]
                   + hs[l] @ params[f"w_hh_{l}"].T + params[f"b_hh_{l}"])
            hs[l] = jnp.tanh(pre)
            inp = hs[l]
    return hs[-1] @ params["fc_w"].T + params["fc_b"]


def init_params(key, input_size, hidden_size, output_size, num_layers):
    """Deterministic synthetic init (PyTorch-style uniform(-1/sqrt(H), 1/sqrt(H)))."""
    params = {}
    bound = 1.0 / (hidden_size ** 0.5)
    for l in range(num_layers):
        in_dim = input_size if l == 0 else hidden_size
        key, k1, k2, k3, k4 = jax.random.split(key, 5)
        params[f"w_ih_{l}"] = jax.random.uniform(
            k1, (hidden_size, in_dim), jnp.float32, -bound, bound)
        params[f"w_hh_{l}"] = jax.random.uniform(
            k2, (hidden_size, hidden_size), jnp.float32, -bound, bound)
        params[f"b_ih_{l}"] = jax.random.uniform(
            k3, (hidden_size,), jnp.float32, -bound, bound)
        params[f"b_hh_{l}"] = jax.random.uniform(
            k4, (hidden_size,), jnp.float32, -bound, bound)
    key, k1, k2 = jax.random.split(key, 3)
    params["fc_w"] = jax.random.uniform(
        k1, (output_size, hidden_size), jnp.float32, -bound, bound)
    params["fc_b"] = jax.random.uniform(
        k2, (output_size,), jnp.float32, -bound, bound)
    return params


if __name__ == "__main__":
    # Small shapes consistent with the module's forward: x is [B, T, input_size].
    B, T = 2, 8
    input_size, hidden_size, output_size, num_layers = 4, 32, 3, 2

    key = jax.random.PRNGKey(0)
    key, kx = jax.random.split(key)
    x = jax.random.normal(kx, (B, T, input_size), jnp.float32)
    params = init_params(key, input_size, hidden_size, output_size, num_layers)

    ref = rnn_reference(x, params, num_layers=num_layers)

    # f32 matmul operands: strict check (also the v5e configuration).
    fwd = jax.jit(functools.partial(rnn_forward, num_layers=num_layers))
    out = jax.block_until_ready(fwd(x, params))
    assert out.shape == (B, output_size)
    assert jnp.allclose(out, ref, atol=1e-5, rtol=1e-5)

    # bf16 matmul operands (recommended for v6e/v7x at scale); h/tanh/accum
    # stay f32, so only MXU input rounding differs -> loose sanity check.
    fwd_bf16 = jax.jit(functools.partial(
        rnn_forward, num_layers=num_layers, matmul_dtype=jnp.bfloat16))
    out_bf16 = jax.block_until_ready(fwd_bf16(x, params))
    assert out_bf16.shape == (B, output_size)
    assert float(jnp.max(jnp.abs(out_bf16 - ref))) < 1e-1

    print("KERNEL_OK")
</pallas_src>

<mosaic_0001>
module attributes {stable_mosaic.version = 11 : i64} {
  func.func @kernel(%arg0: i32, %arg1: memref<8x8x4xf32, #tpu.memory_space<vmem>>, %arg2: memref<4x32xf32, #tpu.memory_space<vmem>>, %arg3: memref<32x32xf32, #tpu.memory_space<vmem>>, %arg4: memref<1x32xf32, #tpu.memory_space<vmem>>, %arg5: memref<32x32xf32, #tpu.memory_space<vmem>>, %arg6: memref<32x32xf32, #tpu.memory_space<vmem>>, %arg7: memref<1x32xf32, #tpu.memory_space<vmem>>, %arg8: memref<32x128xf32, #tpu.memory_space<vmem>>, %arg9: memref<1x128xf32, #tpu.memory_space<vmem>>, %arg10: memref<8x128xf32, #tpu.memory_space<vmem>>, %arg11: memref<8x8x32xf32, #tpu.memory_space<vmem>>) attributes {dimension_semantics = [#tpu.dimension_semantics<parallel>], iteration_bounds = array<i64: 1>, scalar_prefetch = 0 : i64, scratch_operands = 1 : i64, tpu.core_type = #tpu.core_type<tc>, window_params = [{transform_indices = @transform_0, window_bounds = array<i64: 8, 8, 4>}, {pipeline_mode = #tpu.pipeline_mode<synchronous>, transform_indices = @transform_1, window_bounds = array<i64: 4, 32>}, {pipeline_mode = #tpu.pipeline_mode<synchronous>, transform_indices = @transform_2, window_bounds = array<i64: 32, 32>}, {pipeline_mode = #tpu.pipeline_mode<synchronous>, transform_indices = @transform_3, window_bounds = array<i64: 1, 32>}, {pipeline_mode = #tpu.pipeline_mode<synchronous>, transform_indices = @transform_4, window_bounds = array<i64: 32, 32>}, {pipeline_mode = #tpu.pipeline_mode<synchronous>, transform_indices = @transform_5, window_bounds = array<i64: 32, 32>}, {pipeline_mode = #tpu.pipeline_mode<synchronous>, transform_indices = @transform_6, window_bounds = array<i64: 1, 32>}, {pipeline_mode = #tpu.pipeline_mode<synchronous>, transform_indices = @transform_7, window_bounds = array<i64: 32, 128>}, {pipeline_mode = #tpu.pipeline_mode<synchronous>, transform_indices = @transform_8, window_bounds = array<i64: 1, 128>}, {transform_indices = @transform_9, window_bounds = array<i64: 8, 128>}]} {
    %c0 = arith.constant 0 : index
    %c0_0 = arith.constant 0 : index
    %0 = vector.load %arg2[%c0, %c0_0] : memref<4x32xf32, #tpu.memory_space<vmem>>, vector<4x32xf32>
    %c0_1 = arith.constant 0 : index
    %c0_2 = arith.constant 0 : index
    %1 = vector.load %arg3[%c0_1, %c0_2] : memref<32x32xf32, #tpu.memory_space<vmem>>, vector<32x32xf32>
    %c0_3 = arith.constant 0 : index
    %c0_4 = arith.constant 0 : index
    %2 = vector.load %arg4[%c0_3, %c0_4] : memref<1x32xf32, #tpu.memory_space<vmem>>, vector<1x32xf32>
    %c0_5 = arith.constant 0 : index
    %c0_6 = arith.constant 0 : index
    %c0_7 = arith.constant 0 : index
    %3 = vector.load %arg1[%c0_5, %c0_6, %c0_7] : memref<8x8x4xf32, #tpu.memory_space<vmem>>, vector<8x8x4xf32>
    %4 = vector.shape_cast %3 : vector<8x8x4xf32> to vector<64x4xf32>
    %cst = arith.constant dense<0.000000e+00> : vector<64x32xf32>
    %5 = tpu.matmul %4, %0, %cst {dimension_numbers = #tpu.dot_dimension_numbers<[1], [0], [0], [1], [0, 0, 1, 1], [], []>} : vector<64x4xf32>, vector<4x32xf32>, vector<64x32xf32> -> vector<64x32xf32>
    %6 = vector.broadcast %2 : vector<1x32xf32> to vector<64x32xf32>
    %7 = arith.addf %5, %6 : vector<64x32xf32>
    %8 = vector.shape_cast %7 : vector<64x32xf32> to vector<8x8x32xf32>
    %c0_8 = arith.constant 0 : index
    %c0_9 = arith.constant 0 : index
    %c0_10 = arith.constant 0 : index
    %9 = vector.load %arg11[%c0_8, %c0_9, %c0_10] : memref<8x8x32xf32, #tpu.memory_space<vmem>>, vector<8x8x32xf32>
    tpu.vector_store %arg11[%c0_8, %c0_9, %c0_10], %8 {strides = array<i32>} : memref<8x8x32xf32, #tpu.memory_space<vmem>>, vector<8x8x32xf32>,
    %cst_11 = arith.constant 0.000000e+00 : f32
    %10 = vector.broadcast %cst_11 : f32 to vector<8x32xf32>
    %c0_i32 = arith.constant 0 : i32
    %11 = arith.index_cast %c0_i32 : i32 to index
    %c0_12 = arith.constant 0 : index
    %c0_13 = arith.constant 0 : index
    %12 = vector.load %arg11[%11, %c0_12, %c0_13] : memref<8x8x32xf32, #tpu.memory_space<vmem>>, vector<1x8x32xf32>
    %13 = vector.shape_cast %12 : vector<1x8x32xf32> to vector<8x32xf32>
    %cst_14 = arith.constant dense<0.000000e+00> : vector<8x32xf32>
    %14 = tpu.matmul %10, %1, %cst_14 {dimension_numbers = #tpu.dot_dimension_numbers<[1], [0], [0], [1], [0, 0, 1, 1], [], []>} : vector<8x32xf32>, vector<32x32xf32>, vector<8x32xf32> -> vector<8x32xf32>
    %15 = arith.addf %13, %14 : vector<8x32xf32>
    %16 = math.tanh %15 : vector<8x32xf32>
    %17 = arith.index_cast %c0_i32 : i32 to index
    %c0_15 = arith.constant 0 : index
    %c0_16 = arith.constant 0 : index
    %18 = vector.load %arg11[%17, %c0_15, %c0_16] : memref<8x8x32xf32, #tpu.memory_space<vmem>>, vector<1x8x32xf32>
    %19 = vector.shape_cast %18 : vector<1x8x32xf32> to vector<8x32xf32>
    %20 = vector.shape_cast %16 : vector<8x32xf32> to vector<1x8x32xf32>
    tpu.vector_store %arg11[%17, %c0_15, %c0_16], %20 {strides = array<i32>} : memref<8x8x32xf32, #tpu.memory_space<vmem>>, vector<1x8x32xf32>,
    %c1_i32 = arith.constant 1 : i32
    %21 = arith.index_cast %c1_i32 : i32 to index
    %c0_17 = arith.constant 0 : index
    %c0_18 = arith.constant 0 : index
    %22 = vector.load %arg11[%21, %c0_17, %c0_18] : memref<8x8x32xf32, #tpu.memory_space<vmem>>, vector<1x8x32xf32>
    %23 = vector.shape_cast %22 : vector<1x8x32xf32> to vector<8x32xf32>
    %cst_19 = arith.constant dense<0.000000e+00> : vector<8x32xf32>
    %24 = tpu.matmul %16, %1, %cst_19 {dimension_numbers = #tpu.dot_dimension_numbers<[1], [0], [0], [1], [0, 0, 1, 1], [], []>} : vector<8x32xf32>, vector<32x32xf32>, vector<8x32xf32> -> vector<8x32xf32>
    %25 = arith.addf %23, %24 : vector<8x32xf32>
    %26 = math.tanh %25 : vector<8x32xf32>
    %27 = arith.index_cast %c1_i32 : i32 to index
    %c0_20 = arith.constant 0 : index
    %c0_21 = arith.constant 0 : index
    %28 = vector.load %arg11[%27, %c0_20, %c0_21] : memref<8x8x32xf32, #tpu.memory_space<vmem>>, vector<1x8x32xf32>
    %29 = vector.shape_cast %28 : vector<1x8x32xf32> to vector<8x32xf32>
    %30 = vector.shape_cast %26 : vector<8x32xf32> to vector<1x8x32xf32>
    tpu.vector_store %arg11[%27, %c0_20, %c0_21], %30 {strides = array<i32>} : memref<8x8x32xf32, #tpu.memory_space<vmem>>, vector<1x8x32xf32>,
    %c2_i32 = arith.constant 2 : i32
    %31 = arith.index_cast %c2_i32 : i32 to index
    %c0_22 = arith.constant 0 : index
    %c0_23 = arith.constant 0 : index
    %32 = vector.load %arg11[%31, %c0_22, %c0_23] : memref<8x8x32xf32, #tpu.memory_space<vmem>>, vector<1x8x32xf32>
    %33 = vector.shape_cast %32 : vector<1x8x32xf32> to vector<8x32xf32>
    %cst_24 = arith.constant dense<0.000000e+00> : vector<8x32xf32>
    %34 = tpu.matmul %26, %1, %cst_24 {dimension_numbers = #tpu.dot_dimension_numbers<[1], [0], [0], [1], [0, 0, 1, 1], [], []>} : vector<8x32xf32>, vector<32x32xf32>, vector<8x32xf32> -> vector<8x32xf32>
    %35 = arith.addf %33, %34 : vector<8x32xf32>
    %36 = math.tanh %35 : vector<8x32xf32>
    %37 = arith.index_cast %c2_i32 : i32 to index
    %c0_25 = arith.constant 0 : index
    %c0_26 = arith.constant 0 : index
    %38 = vector.load %arg11[%37, %c0_25, %c0_26] : memref<8x8x32xf32, #tpu.memory_space<vmem>>, vector<1x8x32xf32>
    %39 = vector.shape_cast %38 : vector<1x8x32xf32> to vector<8x32xf32>
    %40 = vector.shape_cast %36 : vector<8x32xf32> to vector<1x8x32xf32>
    tpu.vector_store %arg11[%37, %c0_25, %c0_26], %40 {strides = array<i32>} : memref<8x8x32xf32, #tpu.memory_space<vmem>>, vector<1x8x32xf32>,
    %c3_i32 = arith.constant 3 : i32
    %41 = arith.index_cast %c3_i32 : i32 to index
    %c0_27 = arith.constant 0 : index
    %c0_28 = arith.constant 0 : index
    %42 = vector.load %arg11[%41, %c0_27, %c0_28] : memref<8x8x32xf32, #tpu.memory_space<vmem>>, vector<1x8x32xf32>
    %43 = vector.shape_cast %42 : vector<1x8x32xf32> to vector<8x32xf32>
    %cst_29 = arith.constant dense<0.000000e+00> : vector<8x32xf32>
    %44 = tpu.matmul %36, %1, %cst_29 {dimension_numbers = #tpu.dot_dimension_numbers<[1], [0], [0], [1], [0, 0, 1, 1], [], []>} : vector<8x32xf32>, vector<32x32xf32>, vector<8x32xf32> -> vector<8x32xf32>
    %45 = arith.addf %43, %44 : vector<8x32xf32>
    %46 = math.tanh %45 : vector<8x32xf32>
    %47 = arith.index_cast %c3_i32 : i32 to index
    %c0_30 = arith.constant 0 : index
    %c0_31 = arith.constant 0 : index
    %48 = vector.load %arg11[%47, %c0_30, %c0_31] : memref<8x8x32xf32, #tpu.memory_space<vmem>>, vector<1x8x32xf32>
    %49 = vector.shape_cast %48 : vector<1x8x32xf32> to vector<8x32xf32>
    %50 = vector.shape_cast %46 : vector<8x32xf32> to vector<1x8x32xf32>
    tpu.vector_store %arg11[%47, %c0_30, %c0_31], %50 {strides = array<i32>} : memref<8x8x32xf32, #tpu.memory_space<vmem>>, vector<1x8x32xf32>,
    %c4_i32 = arith.constant 4 : i32
    %51 = arith.index_cast %c4_i32 : i32 to index
    %c0_32 = arith.constant 0 : index
    %c0_33 = arith.constant 0 : index
    %52 = vector.load %arg11[%51, %c0_32, %c0_33] : memref<8x8x32xf32, #tpu.memory_space<vmem>>, vector<1x8x32xf32>
    %53 = vector.shape_cast %52 : vector<1x8x32xf32> to vector<8x32xf32>
    %cst_34 = arith.constant dense<0.000000e+00> : vector<8x32xf32>
    %54 = tpu.matmul %46, %1, %cst_34 {dimension_numbers = #tpu.dot_dimension_numbers<[1], [0], [0], [1], [0, 0, 1, 1], [], []>} : vector<8x32xf32>, vector<32x32xf32>, vector<8x32xf32> -> vector<8x32xf32>
    %55 = arith.addf %53, %54 : vector<8x32xf32>
    %56 = math.tanh %55 : vector<8x32xf32>
    %57 = arith.index_cast %c4_i32 : i32 to index
    %c0_35 = arith.constant 0 : index
    %c0_36 = arith.constant 0 : index
    %58 = vector.load %arg11[%57, %c0_35, %c0_36] : memref<8x8x32xf32, #tpu.memory_space<vmem>>, vector<1x8x32xf32>
    %59 = vector.shape_cast %58 : vector<1x8x32xf32> to vector<8x32xf32>
    %60 = vector.shape_cast %56 : vector<8x32xf32> to vector<1x8x32xf32>
    tpu.vector_store %arg11[%57, %c0_35, %c0_36], %60 {strides = array<i32>} : memref<8x8x32xf32, #tpu.memory_space<vmem>>, vector<1x8x32xf32>,
    %c5_i32 = arith.constant 5 : i32
    %61 = arith.index_cast %c5_i32 : i32 to index
    %c0_37 = arith.constant 0 : index
    %c0_38 = arith.constant 0 : index
    %62 = vector.load %arg11[%61, %c0_37, %c0_38] : memref<8x8x32xf32, #tpu.memory_space<vmem>>, vector<1x8x32xf32>
    %63 = vector.shape_cast %62 : vector<1x8x32xf32> to vector<8x32xf32>
    %cst_39 = arith.constant dense<0.000000e+00> : vector<8x32xf32>
    %64 = tpu.matmul %56, %1, %cst_39 {dimension_numbers = #tpu.dot_dimension_numbers<[1], [0], [0], [1], [0, 0, 1, 1], [], []>} : vector<8x32xf32>, vector<32x32xf32>, vector<8x32xf32> -> vector<8x32xf32>
    %65 = arith.addf %63, %64 : vector<8x32xf32>
    %66 = math.tanh %65 : vector<8x32xf32>
    %67 = arith.index_cast %c5_i32 : i32 to index
    %c0_40 = arith.constant 0 : index
    %c0_41 = arith.constant 0 : index
    %68 = vector.load %arg11[%67, %c0_40, %c0_41] : memref<8x8x32xf32, #tpu.memory_space<vmem>>, vector<1x8x32xf32>
    %69 = vector.shape_cast %68 : vector<1x8x32xf32> to vector<8x32xf32>
    %70 = vector.shape_cast %66 : vector<8x32xf32> to vector<1x8x32xf32>
    tpu.vector_store %arg11[%67, %c0_40, %c0_41], %70 {strides = array<i32>} : memref<8x8x32xf32, #tpu.memory_space<vmem>>, vector<1x8x32xf32>,
    %c6_i32 = arith.constant 6 : i32
    %71 = arith.index_cast %c6_i32 : i32 to index
    %c0_42 = arith.constant 0 : index
    %c0_43 = arith.constant 0 : index
    %72 = vector.load %arg11[%71, %c0_42, %c0_43] : memref<8x8x32xf32, #tpu.memory_space<vmem>>, vector<1x8x32xf32>
    %73 = vector.shape_cast %72 : vector<1x8x32xf32> to vector<8x32xf32>
    %cst_44 = arith.constant dense<0.000000e+00> : vector<8x32xf32>
    %74 = tpu.matmul %66, %1, %cst_44 {dimension_numbers = #tpu.dot_dimension_numbers<[1], [0], [0], [1], [0, 0, 1, 1], [], []>} : vector<8x32xf32>, vector<32x32xf32>, vector<8x32xf32> -> vector<8x32xf32>
    %75 = arith.addf %73, %74 : vector<8x32xf32>
    %76 = math.tanh %75 : vector<8x32xf32>
    %77 = arith.index_cast %c6_i32 : i32 to index
    %c0_45 = arith.constant 0 : index
    %c0_46 = arith.constant 0 : index
    %78 = vector.load %arg11[%77, %c0_45, %c0_46] : memref<8x8x32xf32, #tpu.memory_space<vmem>>, vector<1x8x32xf32>
    %79 = vector.shape_cast %78 : vector<1x8x32xf32> to vector<8x32xf32>
    %80 = vector.shape_cast %76 : vector<8x32xf32> to vector<1x8x32xf32>
    tpu.vector_store %arg11[%77, %c0_45, %c0_46], %80 {strides = array<i32>} : memref<8x8x32xf32, #tpu.memory_space<vmem>>, vector<1x8x32xf32>,
    %c7_i32 = arith.constant 7 : i32
    %81 = arith.index_cast %c7_i32 : i32 to index
    %c0_47 = arith.constant 0 : index
    %c0_48 = arith.constant 0 : index
    %82 = vector.load %arg11[%81, %c0_47, %c0_48] : memref<8x8x32xf32, #tpu.memory_space<vmem>>, vector<1x8x32xf32>
    %83 = vector.shape_cast %82 : vector<1x8x32xf32> to vector<8x32xf32>
    %cst_49 = arith.constant dense<0.000000e+00> : vector<8x32xf32>
    %84 = tpu.matmul %76, %1, %cst_49 {dimension_numbers = #tpu.dot_dimension_numbers<[1], [0], [0], [1], [0, 0, 1, 1], [], []>} : vector<8x32xf32>, vector<32x32xf32>, vector<8x32xf32> -> vector<8x32xf32>
    %85 = arith.addf %83, %84 : vector<8x32xf32>
    %86 = math.tanh %85 : vector<8x32xf32>
    %87 = arith.index_cast %c7_i32 : i32 to index
    %c0_50 = arith.constant 0 : index
    %c0_51 = arith.constant 0 : index
    %88 = vector.load %arg11[%87, %c0_50, %c0_51] : memref<8x8x32xf32, #tpu.memory_space<vmem>>, vector<1x8x32xf32>
    %89 = vector.shape_cast %88 : vector<1x8x32xf32> to vector<8x32xf32>
    %90 = vector.shape_cast %86 : vector<8x32xf32> to vector<1x8x32xf32>
    tpu.vector_store %arg11[%87, %c0_50, %c0_51], %90 {strides = array<i32>} : memref<8x8x32xf32, #tpu.memory_space<vmem>>, vector<1x8x32xf32>,
    %c8_i32 = arith.constant 8 : i32
    %c0_52 = arith.constant 0 : index
    %c0_53 = arith.constant 0 : index
    %91 = vector.load %arg5[%c0_52, %c0_53] : memref<32x32xf32, #tpu.memory_space<vmem>>, vector<32x32xf32>
    %c0_54 = arith.constant 0 : index
    %c0_55 = arith.constant 0 : index
    %92 = vector.load %arg6[%c0_54, %c0_55] : memref<32x32xf32, #tpu.memory_space<vmem>>, vector<32x32xf32>
    %c0_56 = arith.constant 0 : index
    %c0_57 = arith.constant 0 : index
    %93 = vector.load %arg7[%c0_56, %c0_57] : memref<1x32xf32, #tpu.memory_space<vmem>>, vector<1x32xf32>
    %c0_58 = arith.constant 0 : index
    %c0_59 = arith.constant 0 : index
    %c0_60 = arith.constant 0 : index
    %94 = vector.load %arg11[%c0_58, %c0_59, %c0_60] : memref<8x8x32xf32, #tpu.memory_space<vmem>>, vector<8x8x32xf32>
    %95 = vector.shape_cast %94 : vector<8x8x32xf32> to vector<64x32xf32>
    %cst_61 = arith.constant dense<0.000000e+00> : vector<64x32xf32>
    %96 = tpu.matmul %95, %91, %cst_61 {dimension_numbers = #tpu.dot_dimension_numbers<[1], [0], [0], [1], [0, 0, 1, 1], [], []>} : vector<64x32xf32>, vector<32x32xf32>, vector<64x32xf32> -> vector<64x32xf32>
    %97 = vector.broadcast %93 : vector<1x32xf32> to vector<64x32xf32>
    %98 = arith.addf %96, %97 : vector<64x32xf32>
    %99 = vector.shape_cast %98 : vector<64x32xf32> to vector<8x8x32xf32>
    %c0_62 = arith.constant 0 : index
    %c0_63 = arith.constant 0 : index
    %c0_64 = arith.constant 0 : index
    %100 = vector.load %arg11[%c0_62, %c0_63, %c0_64] : memref<8x8x32xf32, #tpu.memory_space<vmem>>, vector<8x8x32xf32>
    tpu.vector_store %arg11[%c0_62, %c0_63, %c0_64], %99 {strides = array<i32>} : memref<8x8x32xf32, #tpu.memory_space<vmem>>, vector<8x8x32xf32>,
    %cst_65 = arith.constant 0.000000e+00 : f32
    %101 = vector.broadcast %cst_65 : f32 to vector<8x32xf32>
    %c0_i32_66 = arith.constant 0 : i32
    %102 = arith.index_cast %c0_i32_66 : i32 to index
    %c0_67 = arith.constant 0 : index
    %c0_68 = arith.constant 0 : index
    %103 = vector.load %arg11[%102, %c0_67, %c0_68] : memref<8x8x32xf32, #tpu.memory_space<vmem>>, vector<1x8x32xf32>
    %104 = vector.shape_cast %103 : vector<1x8x32xf32> to vector<8x32xf32>
    %cst_69 = arith.constant dense<0.000000e+00> : vector<8x32xf32>
    %105 = tpu.matmul %101, %92, %cst_69 {dimension_numbers = #tpu.dot_dimension_numbers<[1], [0], [0], [1], [0, 0, 1, 1], [], []>} : vector<8x32xf32>, vector<32x32xf32>, vector<8x32xf32> -> vector<8x32xf32>
    %106 = arith.addf %104, %105 : vector<8x32xf32>
    %107 = math.tanh %106 : vector<8x32xf32>
    %c1_i32_70 = arith.constant 1 : i32
    %108 = arith.index_cast %c1_i32_70 : i32 to index
    %c0_71 = arith.constant 0 : index
    %c0_72 = arith.constant 0 : index
    %109 = vector.load %arg11[%108, %c0_71, %c0_72] : memref<8x8x32xf32, #tpu.memory_space<vmem>>, vector<1x8x32xf32>
    %110 = vector.shape_cast %109 : vector<1x8x32xf32> to vector<8x32xf32>
    %cst_73 = arith.constant dense<0.000000e+00> : vector<8x32xf32>
    %111 = tpu.matmul %107, %92, %cst_73 {dimension_numbers = #tpu.dot_dimension_numbers<[1], [0], [0], [1], [0, 0, 1, 1], [], []>} : vector<8x32xf32>, vector<32x32xf32>, vector<8x32xf32> -> vector<8x32xf32>
    %112 = arith.addf %110, %111 : vector<8x32xf32>
    %113 = math.tanh %112 : vector<8x32xf32>
    %c2_i32_74 = arith.constant 2 : i32
    %114 = arith.index_cast %c2_i32_74 : i32 to index
    %c0_75 = arith.constant 0 : index
    %c0_76 = arith.constant 0 : index
    %115 = vector.load %arg11[%114, %c0_75, %c0_76] : memref<8x8x32xf32, #tpu.memory_space<vmem>>, vector<1x8x32xf32>
    %116 = vector.shape_cast %115 : vector<1x8x32xf32> to vector<8x32xf32>
    %cst_77 = arith.constant dense<0.000000e+00> : vector<8x32xf32>
    %117 = tpu.matmul %113, %92, %cst_77 {dimension_numbers = #tpu.dot_dimension_numbers<[1], [0], [0], [1], [0, 0, 1, 1], [], []>} : vector<8x32xf32>, vector<32x32xf32>, vector<8x32xf32> -> vector<8x32xf32>
    %118 = arith.addf %116, %117 : vector<8x32xf32>
    %119 = math.tanh %118 : vector<8x32xf32>
    %c3_i32_78 = arith.constant 3 : i32
    %120 = arith.index_cast %c3_i32_78 : i32 to index
    %c0_79 = arith.constant 0 : index
    %c0_80 = arith.constant 0 : index
    %121 = vector.load %arg11[%120, %c0_79, %c0_80] : memref<8x8x32xf32, #tpu.memory_space<vmem>>, vector<1x8x32xf32>
    %122 = vector.shape_cast %121 : vector<1x8x32xf32> to vector<8x32xf32>
    %cst_81 = arith.constant dense<0.000000e+00> : vector<8x32xf32>
    %123 = tpu.matmul %119, %92, %cst_81 {dimension_numbers = #tpu.dot_dimension_numbers<[1], [0], [0], [1], [0, 0, 1, 1], [], []>} : vector<8x32xf32>, vector<32x32xf32>, vector<8x32xf32> -> vector<8x32xf32>
    %124 = arith.addf %122, %123 : vector<8x32xf32>
    %125 = math.tanh %124 : vector<8x32xf32>
    %c4_i32_82 = arith.constant 4 : i32
    %126 = arith.index_cast %c4_i32_82 : i32 to index
    %c0_83 = arith.constant 0 : index
    %c0_84 = arith.constant 0 : index
    %127 = vector.load %arg11[%126, %c0_83, %c0_84] : memref<8x8x32xf32, #tpu.memory_space<vmem>>, vector<1x8x32xf32>
    %128 = vector.shape_cast %127 : vector<1x8x32xf32> to vector<8x32xf32>
    %cst_85 = arith.constant dense<0.000000e+00> : vector<8x32xf32>
    %129 = tpu.matmul %125, %92, %cst_85 {dimension_numbers = #tpu.dot_dimension_numbers<[1], [0], [0], [1], [0, 0, 1, 1], [], []>} : vector<8x32xf32>, vector<32x32xf32>, vector<8x32xf32> -> vector<8x32xf32>
    %130 = arith.addf %128, %129 : vector<8x32xf32>
    %131 = math.tanh %130 : vector<8x32xf32>
    %c5_i32_86 = arith.constant 5 : i32
    %132 = arith.index_cast %c5_i32_86 : i32 to index
    %c0_87 = arith.constant 0 : index
    %c0_88 = arith.constant 0 : index
    %133 = vector.load %arg11[%132, %c0_87, %c0_88] : memref<8x8x32xf32, #tpu.memory_space<vmem>>, vector<1x8x32xf32>
    %134 = vector.shape_cast %133 : vector<1x8x32xf32> to vector<8x32xf32>
    %cst_89 = arith.constant dense<0.000000e+00> : vector<8x32xf32>
    %135 = tpu.matmul %131, %92, %cst_89 {dimension_numbers = #tpu.dot_dimension_numbers<[1], [0], [0], [1], [0, 0, 1, 1], [], []>} : vector<8x32xf32>, vector<32x32xf32>, vector<8x32xf32> -> vector<8x32xf32>
    %136 = arith.addf %134, %135 : vector<8x32xf32>
    %137 = math.tanh %136 : vector<8x32xf32>
    %c6_i32_90 = arith.constant 6 : i32
    %138 = arith.index_cast %c6_i32_90 : i32 to index
    %c0_91 = arith.constant 0 : index
    %c0_92 = arith.constant 0 : index
    %139 = vector.load %arg11[%138, %c0_91, %c0_92] : memref<8x8x32xf32, #tpu.memory_space<vmem>>, vector<1x8x32xf32>
    %140 = vector.shape_cast %139 : vector<1x8x32xf32> to vector<8x32xf32>
    %cst_93 = arith.constant dense<0.000000e+00> : vector<8x32xf32>
    %141 = tpu.matmul %137, %92, %cst_93 {dimension_numbers = #tpu.dot_dimension_numbers<[1], [0], [0], [1], [0, 0, 1, 1], [], []>} : vector<8x32xf32>, vector<32x32xf32>, vector<8x32xf32> -> vector<8x32xf32>
    %142 = arith.addf %140, %141 : vector<8x32xf32>
    %143 = math.tanh %142 : vector<8x32xf32>
    %c7_i32_94 = arith.constant 7 : i32
    %144 = arith.index_cast %c7_i32_94 : i32 to index
    %c0_95 = arith.constant 0 : index
    %c0_96 = arith.constant 0 : index
    %145 = vector.load %arg11[%144, %c0_95, %c0_96] : memref<8x8x32xf32, #tpu.memory_space<vmem>>, vector<1x8x32xf32>
    %146 = vector.shape_cast %145 : vector<1x8x32xf32> to vector<8x32xf32>
    %cst_97 = arith.constant dense<0.000000e+00> : vector<8x32xf32>
    %147 = tpu.matmul %143, %92, %cst_97 {dimension_numbers = #tpu.dot_dimension_numbers<[1], [0], [0], [1], [0, 0, 1, 1], [], []>} : vector<8x32xf32>, vector<32x32xf32>, vector<8x32xf32> -> vector<8x32xf32>
    %148 = arith.addf %146, %147 : vector<8x32xf32>
    %149 = math.tanh %148 : vector<8x32xf32>
    %c8_i32_98 = arith.constant 8 : i32
    %c0_99 = arith.constant 0 : index
    %c0_100 = arith.constant 0 : index
    %150 = vector.load %arg8[%c0_99, %c0_100] : memref<32x128xf32, #tpu.memory_space<vmem>>, vector<32x128xf32>
    %cst_101 = arith.constant dense<0.000000e+00> : vector<8x128xf32>
    %151 = tpu.matmul %149, %150, %cst_101 {dimension_numbers = #tpu.dot_dimension_numbers<[1], [0], [0], [1], [0, 0, 1, 1], [], []>} : vector<8x32xf32>, vector<32x128xf32>, vector<8x128xf32> -> vector<8x128xf32>
    %c0_102 = arith.constant 0 : index
    %c0_103 = arith.constant 0 : index
    %152 = vector.load %arg9[%c0_102, %c0_103] : memref<1x128xf32, #tpu.memory_space<vmem>>, vector<1x128xf32>
    %153 = vector.broadcast %152 : vector<1x128xf32> to vector<8x128xf32>
    %154 = arith.addf %151, %153 : vector<8x128xf32>
    %c0_104 = arith.constant 0 : index
    %c0_105 = arith.constant 0 : index
    %155 = vector.load %arg10[%c0_104, %c0_105] : memref<8x128xf32, #tpu.memory_space<vmem>>, vector<8x128xf32>
    tpu.vector_store %arg10[%c0_104, %c0_105], %154 {strides = array<i32>} : memref<8x128xf32, #tpu.memory_space<vmem>>, vector<8x128xf32>,
    return
  }
  func.func @transform_0(%arg0: i32) -> (i32, i32, i32) {
    %c0_i32 = arith.constant 0 : i32
    %c0_i32_0 = arith.constant 0 : i32
    %c0_i32_1 = arith.constant 0 : i32
    return %c0_i32, %arg0, %c0_i32_0 : i32, i32, i32
  }
  func.func @transform_1(%arg0: i32) -> (i32, i32) {
    %c0_i32 = arith.constant 0 : i32
    %c0_i32_0 = arith.constant 0 : i32
    %c0_i32_1 = arith.constant 0 : i32
    return %c0_i32, %c0_i32_0 : i32, i32
  }
  func.func @transform_2(%arg0: i32) -> (i32, i32) {
    %c0_i32 = arith.constant 0 : i32
    %c0_i32_0 = arith.constant 0 : i32
    %c0_i32_1 = arith.constant 0 : i32
    return %c0_i32, %c0_i32_0 : i32, i32
  }
  func.func @transform_3(%arg0: i32) -> (i32, i32) {
    %c0_i32 = arith.constant 0 : i32
    %c0_i32_0 = arith.constant 0 : i32
    %c0_i32_1 = arith.constant 0 : i32
    return %c0_i32, %c0_i32_0 : i32, i32
  }
  func.func @transform_4(%arg0: i32) -> (i32, i32) {
    %c0_i32 = arith.constant 0 : i32
    %c0_i32_0 = arith.constant 0 : i32
    %c0_i32_1 = arith.constant 0 : i32
    return %c0_i32, %c0_i32_0 : i32, i32
  }
  func.func @transform_5(%arg0: i32) -> (i32, i32) {
    %c0_i32 = arith.constant 0 : i32
    %c0_i32_0 = arith.constant 0 : i32
    %c0_i32_1 = arith.constant 0 : i32
    return %c0_i32, %c0_i32_0 : i32, i32
  }
  func.func @transform_6(%arg0: i32) -> (i32, i32) {
    %c0_i32 = arith.constant 0 : i32
    %c0_i32_0 = arith.constant 0 : i32
    %c0_i32_1 = arith.constant 0 : i32
    return %c0_i32, %c0_i32_0 : i32, i32
  }
  func.func @transform_7(%arg0: i32) -> (i32, i32) {
    %c0_i32 = arith.constant 0 : i32
    %c0_i32_0 = arith.constant 0 : i32
    %c0_i32_1 = arith.constant 0 : i32
    return %c0_i32, %c0_i32_0 : i32, i32
  }
  func.func @transform_8(%arg0: i32) -> (i32, i32) {
    %c0_i32 = arith.constant 0 : i32
    %c0_i32_0 = arith.constant 0 : i32
    %c0_i32_1 = arith.constant 0 : i32
    return %c0_i32, %c0_i32_0 : i32, i32
  }
  func.func @transform_9(%arg0: i32) -> (i32, i32) {
    %c0_i32 = arith.constant 0 : i32
    %c0_i32_0 = arith.constant 0 : i32
    return %arg0, %c0_i32 : i32, i32
  }
}

</mosaic_0001>

<llo_original>
// kernel: rnn_forward.1
$region0: #{rnn_forward.1}
  #allocation0 [shape = 'u32[]', space=smem, size = 0x4, offset = 0x4, fixed_abs, tag = 'smem constant byte address 0x4 - core index']
  #allocation1 [shape = 'u32[144,128]{1,0:T(1,128)}', space=vmem, size = 0x12000, scoped, tag = 'internal scratch']
  #allocation2 [shape = 'f32[8,8,32]{2,1,0:T(8,128)}', space=vmem, size = 0x8000, scoped, tag = 'scratch operand']
  %s0 = inlined_call_operand.vmem [shape: f32[8,8,4], index: 0, kind: input, shape index: {}]
  %s1 = inlined_call_operand.vmem [shape: f32[4,32], index: 1, kind: input, shape index: {}]
  %s2 = inlined_call_operand.vmem [shape: f32[32,32], index: 2, kind: input, shape index: {}]
  %s3 = inlined_call_operand.vmem [shape: f32[1,32], index: 3, kind: input, shape index: {}]
  %s4 = inlined_call_operand.vmem [shape: f32[32,32], index: 4, kind: input, shape index: {}]
  %s5 = inlined_call_operand.vmem [shape: f32[32,32], index: 5, kind: input, shape index: {}]
  %s6 = inlined_call_operand.vmem [shape: f32[1,32], index: 6, kind: input, shape index: {}]
  %s7 = inlined_call_operand.vmem [shape: f32[32,128], index: 7, kind: input, shape index: {}]
  %s8 = inlined_call_operand.vmem [shape: f32[1,128], index: 8, kind: input, shape index: {}]
  %s9 = inlined_call_operand.vmem [shape: f32[8,128], index: 9, kind: output, shape index: {}]
  %s10 = sld [smem:[#allocation0]]
  $region46: #{rnn_forward.1} parent=0
    _
  %s12 = ssub.s32 1, %s10
  %s13 = scalar_select 0, %s12, %s10
  // Predicated region
  $region2: #{rnn_forward.1} parent=0 // pred_check
    _
  $region3: #{rnn_forward.1} parent=0 // pred_check_branch
    %15 = sbr.rel (0) target = $region5
  $region4: #{rnn_forward.1} parent=0 // pred_region
    _
  $region5: #{rnn_forward.1} parent=0 // pred_fallthru
    _
  // Predicated region
  $region6: #{rnn_forward.1} parent=0 // pred_check
    _
  $region7: #{rnn_forward.1} parent=0 // pred_check_branch
    %17 = sbr.rel (0) target = $region9
  $region8: #{rnn_forward.1} parent=0 // pred_region
    _
  $region9: #{rnn_forward.1} parent=0 // pred_fallthru
    _
  // Predicated region
  $region10: #{rnn_forward.1} parent=0 // pred_check
    _
  $region11: #{rnn_forward.1} parent=0 // pred_check_branch
    %19 = sbr.rel (0) target = $region13
  $region12: #{rnn_forward.1} parent=0 // pred_region
    _
  $region13: #{rnn_forward.1} parent=0 // pred_fallthru
    _
  // Predicated region
  $region14: #{rnn_forward.1} parent=0 // pred_check
    _
  $region15: #{rnn_forward.1} parent=0 // pred_check_branch
    %21 = sbr.rel (0) target = $region17
  $region16: #{rnn_forward.1} parent=0 // pred_region
    _
  $region17: #{rnn_forward.1} parent=0 // pred_fallthru
    _
  // Predicated region
  $region18: #{rnn_forward.1} parent=0 // pred_check
    _
  $region19: #{rnn_forward.1} parent=0 // pred_check_branch
    %23 = sbr.rel (0) target = $region21
  $region20: #{rnn_forward.1} parent=0 // pred_region
    _
  $region21: #{rnn_forward.1} parent=0 // pred_fallthru
    _
  // Predicated region
  $region22: #{rnn_forward.1} parent=0 // pred_check
    _
  $region23: #{rnn_forward.1} parent=0 // pred_check_branch
    %25 = sbr.rel (0) target = $region25
  $region24: #{rnn_forward.1} parent=0 // pred_region
    _
  $region25: #{rnn_forward.1} parent=0 // pred_fallthru
    _
  // Predicated region
  $region26: #{rnn_forward.1} parent=0 // pred_check
    _
  $region27: #{rnn_forward.1} parent=0 // pred_check_branch
    %27 = sbr.rel (0) target = $region29
  $region28: #{rnn_forward.1} parent=0 // pred_region
    _
  $region29: #{rnn_forward.1} parent=0 // pred_fallthru
    _
  // Predicated region
  $region30: #{rnn_forward.1} parent=0 // pred_check
    _
  $region31: #{rnn_forward.1} parent=0 // pred_check_branch
    %29 = sbr.rel (0) target = $region33
  $region32: #{rnn_forward.1} parent=0 // pred_region
    _
  $region33: #{rnn_forward.1} parent=0 // pred_fallthru
    _
  // Predicated region
  $region34: #{rnn_forward.1} parent=0 // pred_check
    _
  $region35: #{rnn_forward.1} parent=0 // pred_check_branch
    %31 = sbr.rel (0) target = $region37
  $region36: #{rnn_forward.1} parent=0 // pred_region
    _
  $region37: #{rnn_forward.1} parent=0 // pred_fallthru
    _
  %v32 = vld [vmem:[%s1] sm:$0xf]
  %v33 = vld [vmem:[%s2] sm:$0xff]
  %v34 = vld [vmem:[%s2 + $0x8] sm:$0xff]
  %v35 = vld [vmem:[%s2 + $0x10] sm:$0xff]
  %v36 = vld [vmem:[%s2 + $0x18] sm:$0xff]
  %v37 = vld [vmem:[%s3] sm:$0x1]
  %v38 = vld [vmem:[%s0] sm:$0xff]
  %v39 = vld [vmem:[%s0 + $0x8] sm:$0xff]
  %v40 = vld [vmem:[%s0 + $0x10] sm:$0xff]
  %v41 = vld [vmem:[%s0 + $0x18] sm:$0xff]
  %v42 = vld [vmem:[%s0 + $0x20] sm:$0xff]
  %v43 = vld [vmem:[%s0 + $0x28] sm:$0xff]
  %v44 = vld [vmem:[%s0 + $0x30] sm:$0xff]
  %v45 = vld [vmem:[%s0 + $0x38] sm:$0xff]
  %v47 = vlaneseq
  %v48 = vshrl.u32 %v47, 7
  %v49 = vsub.s32 0, %v48
  %v50 = vrot.slane %v37, %v49
  %vm52 = vcmask 31744
  %v54 = vsel %vm52, %v38, 0
  %v57 = vsel %vm52, %v39, 0
  %v60 = vsel %vm52, %v40, 0
  %v63 = vsel %vm52, %v41, 0
  %v66 = vsel %vm52, %v42, 0
  %v69 = vsel %vm52, %v43, 0
  %v72 = vsel %vm52, %v44, 0
  %v75 = vsel %vm52, %v45, 0
  %vm77 = vcmask 1043456
  %v79 = vsel %vm77, %v32, 0
  %81 = vmatprep.subr.mxu0 0.0
  %82 = vmatpush1.msra.mxu0 %v79
  %83 = vmatprep.subr.mxu0 0.0
  %84 = vmatpush1.msra.mxu0 0.0
  %85 = vmatprep.subr.mxu0 0.0
  %86 = vmatpush1.msra.mxu0 0.0
  %87 = vmatprep.subr.mxu0 0.0
  %88 = vmatpush1.msra.mxu0 0.0
  %89 = vmatprep.subr.mxu0 0.0
  %90 = vmatpush1.msra.mxu0 0.0
  %91 = vmatprep.subr.mxu0 0.0
  %92 = vmatpush1.msra.mxu0 0.0
  %93 = vmatprep.subr.mxu0 0.0
  %94 = vmatpush1.msra.mxu0 0.0
  %95 = vmatprep.subr.mxu0 0.0
  %96 = vmatpush1.msra.mxu0 0.0
  %97 = vmatprep.subr.mxu0 0.0
  %98 = vmatpush1.msra.mxu0 0.0
  %99 = vmatprep.subr.mxu0 0.0
  %100 = vmatpush1.msra.mxu0 0.0
  %101 = vmatprep.subr.mxu0 0.0
  %102 = vmatpush1.msra.mxu0 0.0
  %103 = vmatprep.subr.mxu0 0.0
  %104 = vmatpush1.msra.mxu0 0.0
  %105 = vmatprep.subr.mxu0 0.0
  %106 = vmatpush1.msra.mxu0 0.0
  %107 = vmatprep.subr.mxu0 0.0
  %108 = vmatpush1.msra.mxu0 0.0
  %109 = vmatprep.subr.mxu0 0.0
  %110 = vmatpush1.msra.mxu0 0.0
  %111 = vmatprep.subr.mxu0 0.0
  %112 = vmatpush1.msra.mxu0 0.0
  %113 = vmatprep.subr.mxu0 0.0
  %114 = vmatpush1.msra.mxu0 0.0
  %115 = vmatprep.subr.mxu0 0.0
  %116 = vmatpush1.msra.mxu0 0.0
  %117 = vmatprep.subr.mxu0 0.0
  %118 = vmatpush1.msra.mxu0 0.0
  %119 = vmatprep.subr.mxu0 0.0
  %120 = vmatpush1.msra.mxu0 0.0
  %121 = vmatprep.subr.mxu0 0.0
  %122 = vmatpush1.msra.mxu0 0.0
  %123 = vmatprep.subr.mxu0 0.0
  %124 = vmatpush1.msra.mxu0 0.0
  %125 = vmatprep.subr.mxu0 0.0
  %126 = vmatpush1.msra.mxu0 0.0
  %127 = vmatprep.subr.mxu0 0.0
  %128 = vmatpush1.msra.mxu0 0.0
  %129 = vmatprep.subr.mxu0 0.0
  %130 = vmatpush1.msra.mxu0 0.0
  %131 = vmatprep.subr.mxu0 0.0
  %132 = vmatpush1.msra.mxu0 0.0
  %133 = vmatprep.subr.mxu0 0.0
  %134 = vmatpush1.msra.mxu0 0.0
  %135 = vmatprep.subr.mxu0 0.0
  %136 = vmatpush1.msra.mxu0 0.0
  %137 = vmatprep.subr.mxu0 0.0
  %138 = vmatpush1.msra.mxu0 0.0
  %139 = vmatprep.subr.mxu0 0.0
  %140 = vmatpush1.msra.mxu0 0.0
  %141 = vmatprep.subr.mxu0 0.0
  %142 = vmatpush1.msra.mxu0 0.0
  %143 = vmatprep.subr.mxu0 0.0
  %144 = vmatpush1.msra.mxu0 0.0
  %145 = vmatprep.mubr.f32.mxu0 0.0
  %146 = vmatmul.mubr.f32.gmra.mrb[0].mxu0 %v54
  %v147 = vpop.f32.mrb[0].mxu0
  %v148 = vadd.f32 %v50, %v147
  %v149 = vpop.f32.mrb[0].mxu0
  %150 = vmatprep.mubr.f32.mxu0 0.0
  %151 = vmatmul.mubr.f32.gmra.mrb[0].mxu0 %v57
  %v152 = vpop.f32.mrb[0].mxu0
  %v153 = vadd.f32 %v50, %v152
  %v154 = vpop.f32.mrb[0].mxu0
  %155 = vmatprep.mubr.f32.mxu0 0.0
  %156 = vmatmul.mubr.f32.gmra.mrb[0].mxu0 %v60
  %v157 = vpop.f32.mrb[0].mxu0
  %v158 = vadd.f32 %v50, %v157
  %v159 = vpop.f32.mrb[0].mxu0
  %160 = vmatprep.mubr.f32.mxu0 0.0
  %161 = vmatmul.mubr.f32.gmra.mrb[0].mxu0 %v63
  %v162 = vpop.f32.mrb[0].mxu0
  %v163 = vadd.f32 %v50, %v162
  %v164 = vpop.f32.mrb[0].mxu0
  %165 = vmatprep.mubr.f32.mxu0 0.0
  %166 = vmatmul.mubr.f32.gmra.mrb[0].mxu0 %v66
  %v167 = vpop.f32.mrb[0].mxu0
  %v168 = vadd.f32 %v50, %v167
  %v169 = vpop.f32.mrb[0].mxu0
  %170 = vmatprep.mubr.f32.mxu0 0.0
  %171 = vmatmul.mubr.f32.gmra.mrb[0].mxu0 %v69
  %v172 = vpop.f32.mrb[0].mxu0
  %v173 = vadd.f32 %v50, %v172
  %v174 = vpop.f32.mrb[0].mxu0
  %175 = vmatprep.mubr.f32.mxu0 0.0
  %176 = vmatmul.mubr.f32.gmra.mrb[0].mxu0 %v72
  %v177 = vpop.f32.mrb[0].mxu0
  %v178 = vadd.f32 %v50, %v177
  %v179 = vpop.f32.mrb[0].mxu0
  %180 = vmatprep.mubr.f32.mxu0 0.0
  %181 = vmatmul.mubr.f32.gmra.mrb[0].mxu0 %v75
  %v182 = vpop.f32.mrb[0].mxu0
  %v183 = vadd.f32 %v50, %v182
  %v184 = vpop.f32.mrb[0].mxu0
  %185 = vdwg.mxu0
  %vm186 = vcmask 261120
  %187 = vst.msk [vmem:[#allocation2] sm:$0xff] %vm186, %v148
  %188 = vst.msk [vmem:[#allocation2 + $0x8] sm:$0xff] %vm186, %v153
  %189 = vst.msk [vmem:[#allocation2 + $0x10] sm:$0xff] %vm186, %v158
  %190 = vst.msk [vmem:[#allocation2 + $0x18] sm:$0xff] %vm186, %v163
  %191 = vst.msk [vmem:[#allocation2 + $0x20] sm:$0xff] %vm186, %v168
  %192 = vst.msk [vmem:[#allocation2 + $0x28] sm:$0xff] %vm186, %v173
  %193 = vst.msk [vmem:[#allocation2 + $0x30] sm:$0xff] %vm186, %v178
  %194 = vst.msk [vmem:[#allocation2 + $0x38] sm:$0xff] %vm186, %v183
  %v195 = vld [vmem:[#allocation2] sm:$0xff]
  %v197 = vsel %vm186, 0.0, 0
  %199 = vmatprep.subr.mxu0 0.0
  %200 = vmatpush1.msra.mxu0 %v33
  %201 = vmatprep.subr.mxu0 0.0
  %202 = vmatpush1.msra.mxu0 %v34
  %203 = vmatprep.subr.mxu0 0.0
  %204 = vmatpush1.msra.mxu0 %v35
  %205 = vmatprep.subr.mxu0 0.0
  %206 = vmatpush1.msra.mxu0 %v36
  %207 = vmatprep.subr.mxu0 0.0
  %208 = vmatpush1.msra.mxu0 0.0
  %209 = vmatprep.subr.mxu0 0.0
  %210 = vmatpush1.msra.mxu0 0.0
  %211 = vmatprep.subr.mxu0 0.0
  %212 = vmatpush1.msra.mxu0 0.0
  %213 = vmatprep.subr.mxu0 0.0
  %214 = vmatpush1.msra.mxu0 0.0
  %215 = vmatprep.subr.mxu0 0.0
  %216 = vmatpush1.msra.mxu0 0.0
  %217 = vmatprep.subr.mxu0 0.0
  %218 = vmatpush1.msra.mxu0 0.0
  %219 = vmatprep.subr.mxu0 0.0
  %220 = vmatpush1.msra.mxu0 0.0
  %221 = vmatprep.subr.mxu0 0.0
  %222 = vmatpush1.msra.mxu0 0.0
  %223 = vmatprep.subr.mxu0 0.0
  %224 = vmatpush1.msra.mxu0 0.0
  %225 = vmatprep.subr.mxu0 0.0
  %226 = vmatpush1.msra.mxu0 0.0
  %227 = vmatprep.subr.mxu0 0.0
  %228 = vmatpush1.msra.mxu0 0.0
  %229 = vmatprep.subr.mxu0 0.0
  %230 = vmatpush1.msra.mxu0 0.0
  %231 = vmatprep.subr.mxu0 0.0
  %232 = vmatpush1.msra.mxu0 0.0
  %233 = vmatprep.subr.mxu0 0.0
  %234 = vmatpush1.msra.mxu0 0.0
  %235 = vmatprep.subr.mxu0 0.0
  %236 = vmatpush1.msra.mxu0 0.0
  %237 = vmatprep.subr.mxu0 0.0
  %238 = vmatpush1.msra.mxu0 0.0
  %239 = vmatprep.subr.mxu0 0.0
  %240 = vmatpush1.msra.mxu0 0.0
  %241 = vmatprep.subr.mxu0 0.0
  %242 = vmatpush1.msra.mxu0 0.0
  %243 = vmatprep.subr.mxu0 0.0
  %244 = vmatpush1.msra.mxu0 0.0
  %245 = vmatprep.subr.mxu0 0.0
  %246 = vmatpush1.msra.mxu0 0.0
  %247 = vmatprep.subr.mxu0 0.0
  %248 = vmatpush1.msra.mxu0 0.0
  %249 = vmatprep.subr.mxu0 0.0
  %250 = vmatpush1.msra.mxu0 0.0
  %251 = vmatprep.subr.mxu0 0.0
  %252 = vmatpush1.msra.mxu0 0.0
  %253 = vmatprep.subr.mxu0 0.0
  %254 = vmatpush1.msra.mxu0 0.0
  %255 = vmatprep.subr.mxu0 0.0
  %256 = vmatpush1.msra.mxu0 0.0
  %257 = vmatprep.subr.mxu0 0.0
  %258 = vmatpush1.msra.mxu0 0.0
  %259 = vmatprep.subr.mxu0 0.0
  %260 = vmatpush1.msra.mxu0 0.0
  %261 = vmatprep.subr.mxu0 0.0
  %262 = vmatpush1.msra.mxu0 0.0
  %263 = vmatprep.mubr.f32.mxu0 0.0
  %264 = vmatmul.mubr.f32.gmra.mrb[0].mxu0 %v197
  %v265 = vpop.f32.mrb[0].mxu0
  %v266 = vadd.f32 0.0, %v265
  %v267 = vpop.f32.mrb[0].mxu0
  %268 = vdwg.mxu0
  %v269 = vadd.f32 %v195, %v266
  %v270 = vtanh.pop %v269
  %271 = vst.msk [vmem:[#allocation2] sm:$0xff] %vm186, %v270
  %s272 = scalar_lea.vmem [#allocation2], 8
  %v273 = vld [vmem:[%s272] sm:$0xff]
  %v275 = vsel %vm186, %v270, 0
  %277 = vmatprep.subr.mxu0 0.0
  %278 = vmatpush1.msra.mxu0 %v33
  %279 = vmatprep.subr.mxu0 0.0
  %280 = vmatpush1.msra.mxu0 %v34
  %281 = vmatprep.subr.mxu0 0.0
  %282 = vmatpush1.msra.mxu0 %v35
  %283 = vmatprep.subr.mxu0 0.0
  %284 = vmatpush1.msra.mxu0 %v36
  %285 = vmatprep.subr.mxu0 0.0
  %286 = vmatpush1.msra.mxu0 0.0
  %287 = vmatprep.subr.mxu0 0.0
  %288 = vmatpush1.msra.mxu0 0.0
  %289 = vmatprep.subr.mxu0 0.0
  %290 = vmatpush1.msra.mxu0 0.0
  %291 = vmatprep.subr.mxu0 0.0
  %292 = vmatpush1.msra.mxu0 0.0
  %293 = vmatprep.subr.mxu0 0.0
  %294 = vmatpush1.msra.mxu0 0.0
  %295 = vmatprep.subr.mxu0 0.0
  %296 = vmatpush1.msra.mxu0 0.0
  %297 = vmatprep.subr.mxu0 0.0
  %298 = vmatpush1.msra.mxu0 0.0
  %299 = vmatprep.subr.mxu0 0.0
  %300 = vmatpush1.msra.mxu0 0.0
  %301 = vmatprep.subr.mxu0 0.0
  %302 = vmatpush1.msra.mxu0 0.0
  %303 = vmatprep.subr.mxu0 0.0
  %304 = vmatpush1.msra.mxu0 0.0
  %305 = vmatprep.subr.mxu0 0.0
  %306 = vmatpush1.msra.mxu0 0.0
  %307 = vmatprep.subr.mxu0 0.0
  %308 = vmatpush1.msra.mxu0 0.0
  %309 = vmatprep.subr.mxu0 0.0
  %310 = vmatpush1.msra.mxu0 0.0
  %311 = vmatprep.subr.mxu0 0.0
  %312 = vmatpush1.msra.mxu0 0.0
  %313 = vmatprep.subr.mxu0 0.0
  %314 = vmatpush1.msra.mxu0 0.0
  %315 = vmatprep.subr.mxu0 0.0
  %316 = vmatpush1.msra.mxu0 0.0
  %317 = vmatprep.subr.mxu0 0.0
  %318 = vmatpush1.msra.mxu0 0.0
  %319 = vmatprep.subr.mxu0 0.0
  %320 = vmatpush1.msra.mxu0 0.0
  %321 = vmatprep.subr.mxu0 0.0
  %322 = vmatpush1.msra.mxu0 0.0
  %323 = vmatprep.subr.mxu0 0.0
  %324 = vmatpush1.msra.mxu0 0.0
  %325 = vmatprep.subr.mxu0 0.0
  %326 = vmatpush1.msra.mxu0 0.0
  %327 = vmatprep.subr.mxu0 0.0
  %328 = vmatpush1.msra.mxu0 0.0
  %329 = vmatprep.subr.mxu0 0.0
  %330 = vmatpush1.msra.mxu0 0.0
  %331 = vmatprep.subr.mxu0 0.0
  %332 = vmatpush1.msra.mxu0 0.0
  %333 = vmatprep.subr.mxu0 0.0
  %334 = vmatpush1.msra.mxu0 0.0
  %335 = vmatprep.subr.mxu0 0.0
  %336 = vmatpush1.msra.mxu0 0.0
  %337 = vmatprep.subr.mxu0 0.0
  %338 = vmatpush1.msra.mxu0 0.0
  %339 = vmatprep.subr.mxu0 0.0
  %340 = vmatpush1.msra.mxu0 0.0
  %341 = vmatprep.mubr.f32.mxu0 0.0
  %342 = vmatmul.mubr.f32.gmra.mrb[0].mxu0 %v275
  %v343 = vpop.f32.mrb[0].mxu0
  %v344 = vadd.f32 0.0, %v343
  %v345 = vpop.f32.mrb[0].mxu0
  %346 = vdwg.mxu0
  %v347 = vadd.f32 %v273, %v344
  %v348 = vtanh.pop %v347
  %349 = vst.msk [vmem:[%s272] sm:$0xff] %vm186, %v348
  %s350 = scalar_lea.vmem [#allocation2], 16
  %v351 = vld [vmem:[%s350] sm:$0xff]
  %v353 = vsel %vm186, %v348, 0
  %355 = vmatprep.subr.mxu0 0.0
  %356 = vmatpush1.msra.mxu0 %v33
  %357 = vmatprep.subr.mxu0 0.0
  %358 = vmatpush1.msra.mxu0 %v34
  %359 = vmatprep.subr.mxu0 0.0
  %360 = vmatpush1.msra.mxu0 %v35
  %361 = vmatprep.subr.mxu0 0.0
  %362 = vmatpush1.msra.mxu0 %v36
  %363 = vmatprep.subr.mxu0 0.0
  %364 = vmatpush1.msra.mxu0 0.0
  %365 = vmatprep.subr.mxu0 0.0
  %366 = vmatpush1.msra.mxu0 0.0
  %367 = vmatprep.subr.mxu0 0.0
  %368 = vmatpush1.msra.mxu0 0.0
  %369 = vmatprep.subr.mxu0 0.0
  %370 = vmatpush1.msra.mxu0 0.0
  %371 = vmatprep.subr.mxu0 0.0
  %372 = vmatpush1.msra.mxu0 0.0
  %373 = vmatprep.subr.mxu0 0.0
  %374 = vmatpush1.msra.mxu0 0.0
  %375 = vmatprep.subr.mxu0 0.0
  %376 = vmatpush1.msra.mxu0 0.0
  %377 = vmatprep.subr.mxu0 0.0
  %378 = vmatpush1.msra.mxu0 0.0
  %379 = vmatprep.subr.mxu0 0.0
  %380 = vmatpush1.msra.mxu0 0.0
  %381 = vmatprep.subr.mxu0 0.0
  %382 = vmatpush1.msra.mxu0 0.0
  %383 = vmatprep.subr.mxu0 0.0
  %384 = vmatpush1.msra.mxu0 0.0
  %385 = vmatprep.subr.mxu0 0.0
  %386 = vmatpush1.msra.mxu0 0.0
  %387 = vmatprep.subr.mxu0 0.0
  %388 = vmatpush1.msra.mxu0 0.0
  %389 = vmatprep.subr.mxu0 0.0
  %390 = vmatpush1.msra.mxu0 0.0
  %391 = vmatprep.subr.mxu0 0.0
  %392 = vmatpush1.msra.mxu0 0.0
  %393 = vmatprep.subr.mxu0 0.0
  %394 = vmatpush1.msra.mxu0 0.0
  %395 = vmatprep.subr.mxu0 0.0
  %396 = vmatpush1.msra.mxu0 0.0
  %397 = vmatprep.subr.mxu0 0.0
  %398 = vmatpush1.msra.mxu0 0.0
  %399 = vmatprep.subr.mxu0 0.0
  %400 = vmatpush1.msra.mxu0 0.0
  %401 = vmatprep.subr.mxu0 0.0
  %402 = vmatpush1.msra.mxu0 0.0
  %403 = vmatprep.subr.mxu0 0.0
  %404 = vmatpush1.msra.mxu0 0.0
  %405 = vmatprep.subr.mxu0 0.0
  %406 = vmatpush1.msra.mxu0 0.0
  %407 = vmatprep.subr.mxu0 0.0
  %408 = vmatpush1.msra.mxu0 0.0
  %409 = vmatprep.subr.mxu0 0.0
  %410 = vmatpush1.msra.mxu0 0.0
  %411 = vmatprep.subr.mxu0 0.0
  %412 = vmatpush1.msra.mxu0 0.0
  %413 = vmatprep.subr.mxu0 0.0
  %414 = vmatpush1.msra.mxu0 0.0
  %415 = vmatprep.subr.mxu0 0.0
  %416 = vmatpush1.msra.mxu0 0.0
  %417 = vmatprep.subr.mxu0 0.0
  %418 = vmatpush1.msra.mxu0 0.0
  %419 = vmatprep.mubr.f32.mxu0 0.0
  %420 = vmatmul.mubr.f32.gmra.mrb[0].mxu0 %v353
  %v421 = vpop.f32.mrb[0].mxu0
  %v422 = vadd.f32 0.0, %v421
  %v423 = vpop.f32.mrb[0].mxu0
  %424 = vdwg.mxu0
  %v425 = vadd.f32 %v351, %v422
  %v426 = vtanh.pop %v425
  %427 = vst.msk [vmem:[%s350] sm:$0xff] %vm186, %v426
  %s428 = scalar_lea.vmem [#allocation2], 24
  %v429 = vld [vmem:[%s428] sm:$0xff]
  %v431 = vsel %vm186, %v426, 0
  %433 = vmatprep.subr.mxu0 0.0
  %434 = vmatpush1.msra.mxu0 %v33
  %435 = vmatprep.subr.mxu0 0.0
  %436 = vmatpush1.msra.mxu0 %v34
  %437 = vmatprep.subr.mxu0 0.0
  %438 = vmatpush1.msra.mxu0 %v35
  %439 = vmatprep.subr.mxu0 0.0
  %440 = vmatpush1.msra.mxu0 %v36
  %441 = vmatprep.subr.mxu0 0.0
  %442 = vmatpush1.msra.mxu0 0.0
  %443 = vmatprep.subr.mxu0 0.0
  %444 = vmatpush1.msra.mxu0 0.0
  %445 = vmatprep.subr.mxu0 0.0
  %446 = vmatpush1.msra.mxu0 0.0
  %447 = vmatprep.subr.mxu0 0.0
  %448 = vmatpush1.msra.mxu0 0.0
  %449 = vmatprep.subr.mxu0 0.0
  %450 = vmatpush1.msra.mxu0 0.0
  %451 = vmatprep.subr.mxu0 0.0
  %452 = vmatpush1.msra.mxu0 0.0
  %453 = vmatprep.subr.mxu0 0.0
  %454 = vmatpush1.msra.mxu0 0.0
  %455 = vmatprep.subr.mxu0 0.0
  %456 = vmatpush1.msra.mxu0 0.0
  %457 = vmatprep.subr.mxu0 0.0
  %458 = vmatpush1.msra.mxu0 0.0
  %459 = vmatprep.subr.mxu0 0.0
  %460 = vmatpush1.msra.mxu0 0.0
  %461 = vmatprep.subr.mxu0 0.0
  %462 = vmatpush1.msra.mxu0 0.0
  %463 = vmatprep.subr.mxu0 0.0
  %464 = vmatpush1.msra.mxu0 0.0
  %465 = vmatprep.subr.mxu0 0.0
  %466 = vmatpush1.msra.mxu0 0.0
  %467 = vmatprep.subr.mxu0 0.0
  %468 = vmatpush1.msra.mxu0 0.0
  %469 = vmatprep.subr.mxu0 0.0
  %470 = vmatpush1.msra.mxu0 0.0
  %471 = vmatprep.subr.mxu0 0.0
  %472 = vmatpush1.msra.mxu0 0.0
  %473 = vmatprep.subr.mxu0 0.0
  %474 = vmatpush1.msra.mxu0 0.0
  %475 = vmatprep.subr.mxu0 0.0
  %476 = vmatpush1.msra.mxu0 0.0
  %477 = vmatprep.subr.mxu0 0.0
  %478 = vmatpush1.msra.mxu0 0.0
  %479 = vmatprep.subr.mxu0 0.0
  %480 = vmatpush1.msra.mxu0 0.0
  %481 = vmatprep.subr.mxu0 0.0
  %482 = vmatpush1.msra.mxu0 0.0
  %483 = vmatprep.subr.mxu0 0.0
  %484 = vmatpush1.msra.mxu0 0.0
  %485 = vmatprep.subr.mxu0 0.0
  %486 = vmatpush1.msra.mxu0 0.0
  %487 = vmatprep.subr.mxu0 0.0
  %488 = vmatpush1.msra.mxu0 0.0
  %489 = vmatprep.subr.mxu0 0.0
  %490 = vmatpush1.msra.mxu0 0.0
  %491 = vmatprep.subr.mxu0 0.0
  %492 = vmatpush1.msra.mxu0 0.0
  %493 = vmatprep.subr.mxu0 0.0
  %494 = vmatpush1.msra.mxu0 0.0
  %495 = vmatprep.subr.mxu0 0.0
  %496 = vmatpush1.msra.mxu0 0.0
  %497 = vmatprep.mubr.f32.mxu0 0.0
  %498 = vmatmul.mubr.f32.gmra.mrb[0].mxu0 %v431
  %v499 = vpop.f32.mrb[0].mxu0
  %v500 = vadd.f32 0.0, %v499
  %v501 = vpop.f32.mrb[0].mxu0
  %502 = vdwg.mxu0
  %v503 = vadd.f32 %v429, %v500
  %v504 = vtanh.pop %v503
  %505 = vst.msk [vmem:[%s428] sm:$0xff] %vm186, %v504
  %s506 = scalar_lea.vmem [#allocation2], 32
  %v507 = vld [vmem:[%s506] sm:$0xff]
  %v509 = vsel %vm186, %v504, 0
  %511 = vmatprep.subr.mxu0 0.0
  %512 = vmatpush1.msra.mxu0 %v33
  %513 = vmatprep.subr.mxu0 0.0
  %514 = vmatpush1.msra.mxu0 %v34
  %515 = vmatprep.subr.mxu0 0.0
  %516 = vmatpush1.msra.mxu0 %v35
  %517 = vmatprep.subr.mxu0 0.0
  %518 = vmatpush1.msra.mxu0 %v36
  %519 = vmatprep.subr.mxu0 0.0
  %520 = vmatpush1.msra.mxu0 0.0
  %521 = vmatprep.subr.mxu0 0.0
  %522 = vmatpush1.msra.mxu0 0.0
  %523 = vmatprep.subr.mxu0 0.0
  %524 = vmatpush1.msra.mxu0 0.0
  %525 = vmatprep.subr.mxu0 0.0
  %526 = vmatpush1.msra.mxu0 0.0
  %527 = vmatprep.subr.mxu0 0.0
  %528 = vmatpush1.msra.mxu0 0.0
  %529 = vmatprep.subr.mxu0 0.0
  %530 = vmatpush1.msra.mxu0 0.0
  %531 = vmatprep.subr.mxu0 0.0
  %532 = vmatpush1.msra.mxu0 0.0
  %533 = vmatprep.subr.mxu0 0.0
  %534 = vmatpush1.msra.mxu0 0.0
  %535 = vmatprep.subr.mxu0 0.0
  %536 = vmatpush1.msra.mxu0 0.0
  %537 = vmatprep.subr.mxu0 0.0
  %538 = vmatpush1.msra.mxu0 0.0
  %539 = vmatprep.subr.mxu0 0.0
  %540 = vmatpush1.msra.mxu0 0.0
  %541 = vmatprep.subr.mxu0 0.0
  %542 = vmatpush1.msra.mxu0 0.0
  %543 = vmatprep.subr.mxu0 0.0
  %544 = vmatpush1.msra.mxu0 0.0
  %545 = vmatprep.subr.mxu0 0.0
  %546 = vmatpush1.msra.mxu0 0.0
  %547 = vmatprep.subr.mxu0 0.0
  %548 = vmatpush1.msra.mxu0 0.0
  %549 = vmatprep.subr.mxu0 0.0
  %550 = vmatpush1.msra.mxu0 0.0
  %551 = vmatprep.subr.mxu0 0.0
  %552 = vmatpush1.msra.mxu0 0.0
  %553 = vmatprep.subr.mxu0 0.0
  %554 = vmatpush1.msra.mxu0 0.0
  %555 = vmatprep.subr.mxu0 0.0
  %556 = vmatpush1.msra.mxu0 0.0
  %557 = vmatprep.subr.mxu0 0.0
  %558 = vmatpush1.msra.mxu0 0.0
  %559 = vmatprep.subr.mxu0 0.0
  %560 = vmatpush1.msra.mxu0 0.0
  %561 = vmatprep.subr.mxu0 0.0
  %562 = vmatpush1.msra.mxu0 0.0
  %563 = vmatprep.subr.mxu0 0.0
  %564 = vmatpush1.msra.mxu0 0.0
  %565 = vmatprep.subr.mxu0 0.0
  %566 = vmatpush1.msra.mxu0 0.0
  %567 = vmatprep.subr.mxu0 0.0
  %568 = vmatpush1.msra.mxu0 0.0
  %569 = vmatprep.subr.mxu0 0.0
  %570 = vmatpush1.msra.mxu0 0.0
  %571 = vmatprep.subr.mxu0 0.0
  %572 = vmatpush1.msra.mxu0 0.0
  %573 = vmatprep.subr.mxu0 0.0
  %574 = vmatpush1.msra.mxu0 0.0
  %575 = vmatprep.mubr.f32.mxu0 0.0
  %576 = vmatmul.mubr.f32.gmra.mrb[0].mxu0 %v509
  %v577 = vpop.f32.mrb[0].mxu0
  %v578 = vadd.f32 0.0, %v577
  %v579 = vpop.f32.mrb[0].mxu0
  %580 = vdwg.mxu0
  %v581 = vadd.f32 %v507, %v578
  %v582 = vtanh.pop %v581
  %583 = vst.msk [vmem:[%s506] sm:$0xff] %vm186, %v582
  %s584 = scalar_lea.vmem [#allocation2], 40
  %v585 = vld [vmem:[%s584] sm:$0xff]
  %v587 = vsel %vm186, %v582, 0
  %589 = vmatprep.subr.mxu0 0.0
  %590 = vmatpush1.msra.mxu0 %v33
  %591 = vmatprep.subr.mxu0 0.0
  %592 = vmatpush1.msra.mxu0 %v34
  %593 = vmatprep.subr.mxu0 0.0
  %594 = vmatpush1.msra.mxu0 %v35
  %595 = vmatprep.subr.mxu0 0.0
  %596 = vmatpush1.msra.mxu0 %v36
  %597 = vmatprep.subr.mxu0 0.0
  %598 = vmatpush1.msra.mxu0 0.0
  %599 = vmatprep.subr.mxu0 0.0
  %600 = vmatpush1.msra.mxu0 0.0
  %601 = vmatprep.subr.mxu0 0.0
  %602 = vmatpush1.msra.mxu0 0.0
  %603 = vmatprep.subr.mxu0 0.0
  %604 = vmatpush1.msra.mxu0 0.0
  %605 = vmatprep.subr.mxu0 0.0
  %606 = vmatpush1.msra.mxu0 0.0
  %607 = vmatprep.subr.mxu0 0.0
  %608 = vmatpush1.msra.mxu0 0.0
  %609 = vmatprep.subr.mxu0 0.0
  %610 = vmatpush1.msra.mxu0 0.0
  %611 = vmatprep.subr.mxu0 0.0
  %612 = vmatpush1.msra.mxu0 0.0
  %613 = vmatprep.subr.mxu0 0.0
  %614 = vmatpush1.msra.mxu0 0.0
  %615 = vmatprep.subr.mxu0 0.0
  %616 = vmatpush1.msra.mxu0 0.0
  %617 = vmatprep.subr.mxu0 0.0
  %618 = vmatpush1.msra.mxu0 0.0
  %619 = vmatprep.subr.mxu0 0.0
  %620 = vmatpush1.msra.mxu0 0.0
  %621 = vmatprep.subr.mxu0 0.0
  %622 = vmatpush1.msra.mxu0 0.0
  %623 = vmatprep.subr.mxu0 0.0
  %624 = vmatpush1.msra.mxu0 0.0
  %625 = vmatprep.subr.mxu0 0.0
  %626 = vmatpush1.msra.mxu0 0.0
  %627 = vmatprep.subr.mxu0 0.0
  %628 = vmatpush1.msra.mxu0 0.0
  %629 = vmatprep.subr.mxu0 0.0
  %630 = vmatpush1.msra.mxu0 0.0
  %631 = vmatprep.subr.mxu0 0.0
  %632 = vmatpush1.msra.mxu0 0.0
  %633 = vmatprep.subr.mxu0 0.0
  %634 = vmatpush1.msra.mxu0 0.0
  %635 = vmatprep.subr.mxu0 0.0
  %636 = vmatpush1.msra.mxu0 0.0
  %637 = vmatprep.subr.mxu0 0.0
  %638 = vmatpush1.msra.mxu0 0.0
  %639 = vmatprep.subr.mxu0 0.0
  %640 = vmatpush1.msra.mxu0 0.0
  %641 = vmatprep.subr.mxu0 0.0
  %642 = vmatpush1.msra.mxu0 0.0
  %643 = vmatprep.subr.mxu0 0.0
  %644 = vmatpush1.msra.mxu0 0.0
  %645 = vmatprep.subr.mxu0 0.0
  %646 = vmatpush1.msra.mxu0 0.0
  %647 = vmatprep.subr.mxu0 0.0
  %648 = vmatpush1.msra.mxu0 0.0
  %649 = vmatprep.subr.mxu0 0.0
  %650 = vmatpush1.msra.mxu0 0.0
  %651 = vmatprep.subr.mxu0 0.0
  %652 = vmatpush1.msra.mxu0 0.0
  %653 = vmatprep.mubr.f32.mxu0 0.0
  %654 = vmatmul.mubr.f32.gmra.mrb[0].mxu0 %v587
  %v655 = vpop.f32.mrb[0].mxu0
  %v656 = vadd.f32 0.0, %v655
  %v657 = vpop.f32.mrb[0].mxu0
  %658 = vdwg.mxu0
  %v659 = vadd.f32 %v585, %v656
  %v660 = vtanh.pop %v659
  %661 = vst.msk [vmem:[%s584] sm:$0xff] %vm186, %v660
  %s662 = scalar_lea.vmem [#allocation2], 48
  %v663 = vld [vmem:[%s662] sm:$0xff]
  %v665 = vsel %vm186, %v660, 0
  %667 = vmatprep.subr.mxu0 0.0
  %668 = vmatpush1.msra.mxu0 %v33
  %669 = vmatprep.subr.mxu0 0.0
  %670 = vmatpush1.msra.mxu0 %v34
  %671 = vmatprep.subr.mxu0 0.0
  %672 = vmatpush1.msra.mxu0 %v35
  %673 = vmatprep.subr.mxu0 0.0
  %674 = vmatpush1.msra.mxu0 %v36
  %675 = vmatprep.subr.mxu0 0.0
  %676 = vmatpush1.msra.mxu0 0.0
  %677 = vmatprep.subr.mxu0 0.0
  %678 = vmatpush1.msra.mxu0 0.0
  %679 = vmatprep.subr.mxu0 0.0
  %680 = vmatpush1.msra.mxu0 0.0
  %681 = vmatprep.subr.mxu0 0.0
  %682 = vmatpush1.msra.mxu0 0.0
  %683 = vmatprep.subr.mxu0 0.0
  %684 = vmatpush1.msra.mxu0 0.0
  %685 = vmatprep.subr.mxu0 0.0
  %686 = vmatpush1.msra.mxu0 0.0
  %687 = vmatprep.subr.mxu0 0.0
  %688 = vmatpush1.msra.mxu0 0.0
  %689 = vmatprep.subr.mxu0 0.0
  %690 = vmatpush1.msra.mxu0 0.0
  %691 = vmatprep.subr.mxu0 0.0
  %692 = vmatpush1.msra.mxu0 0.0
  %693 = vmatprep.subr.mxu0 0.0
  %694 = vmatpush1.msra.mxu0 0.0
  %695 = vmatprep.subr.mxu0 0.0
  %696 = vmatpush1.msra.mxu0 0.0
  %697 = vmatprep.subr.mxu0 0.0
  %698 = vmatpush1.msra.mxu0 0.0
  %699 = vmatprep.subr.mxu0 0.0
  %700 = vmatpush1.msra.mxu0 0.0
  %701 = vmatprep.subr.mxu0 0.0
  %702 = vmatpush1.msra.mxu0 0.0
  %703 = vmatprep.subr.mxu0 0.0
  %704 = vmatpush1.msra.mxu0 0.0
  %705 = vmatprep.subr.mxu0 0.0
  %706 = vmatpush1.msra.mxu0 0.0
  %707 = vmatprep.subr.mxu0 0.0
  %708 = vmatpush1.msra.mxu0 0.0
  %709 = vmatprep.subr.mxu0 0.0
  %710 = vmatpush1.msra.mxu0 0.0
  %711 = vmatprep.subr.mxu0 0.0
  %712 = vmatpush1.msra.mxu0 0.0
  %713 = vmatprep.subr.mxu0 0.0
  %714 = vmatpush1.msra.mxu0 0.0
  %715 = vmatprep.subr.mxu0 0.0
  %716 = vmatpush1.msra.mxu0 0.0
  %717 = vmatprep.subr.mxu0 0.0
  %718 = vmatpush1.msra.mxu0 0.0
  %719 = vmatprep.subr.mxu0 0.0
  %720 = vmatpush1.msra.mxu0 0.0
  %721 = vmatprep.subr.mxu0 0.0
  %722 = vmatpush1.msra.mxu0 0.0
  %723 = vmatprep.subr.mxu0 0.0
  %724 = vmatpush1.msra.mxu0 0.0
  %725 = vmatprep.subr.mxu0 0.0
  %726 = vmatpush1.msra.mxu0 0.0
  %727 = vmatprep.subr.mxu0 0.0
  %728 = vmatpush1.msra.mxu0 0.0
  %729 = vmatprep.subr.mxu0 0.0
  %730 = vmatpush1.msra.mxu0 0.0
  %731 = vmatprep.mubr.f32.mxu0 0.0
  %732 = vmatmul.mubr.f32.gmra.mrb[0].mxu0 %v665
  %v733 = vpop.f32.mrb[0].mxu0
  %v734 = vadd.f32 0.0, %v733
  %v735 = vpop.f32.mrb[0].mxu0
  %736 = vdwg.mxu0
  %v737 = vadd.f32 %v663, %v734
  %v738 = vtanh.pop %v737
  %739 = vst.msk [vmem:[%s662] sm:$0xff] %vm186, %v738
  %s740 = scalar_lea.vmem [#allocation2], 56
  %v741 = vld [vmem:[%s740] sm:$0xff]
  %v743 = vsel %vm186, %v738, 0
  %745 = vmatprep.subr.mxu0 0.0
  %746 = vmatpush1.msra.mxu0 %v33
  %747 = vmatprep.subr.mxu0 0.0
  %748 = vmatpush1.msra.mxu0 %v34
  %749 = vmatprep.subr.mxu0 0.0
  %750 = vmatpush1.msra.mxu0 %v35
  %751 = vmatprep.subr.mxu0 0.0
  %752 = vmatpush1.msra.mxu0 %v36
  %753 = vmatprep.subr.mxu0 0.0
  %754 = vmatpush1.msra.mxu0 0.0
  %755 = vmatprep.subr.mxu0 0.0
  %756 = vmatpush1.msra.mxu0 0.0
  %757 = vmatprep.subr.mxu0 0.0
  %758 = vmatpush1.msra.mxu0 0.0
  %759 = vmatprep.subr.mxu0 0.0
  %760 = vmatpush1.msra.mxu0 0.0
  %761 = vmatprep.subr.mxu0 0.0
  %762 = vmatpush1.msra.mxu0 0.0
  %763 = vmatprep.subr.mxu0 0.0
  %764 = vmatpush1.msra.mxu0 0.0
  %765 = vmatprep.subr.mxu0 0.0
  %766 = vmatpush1.msra.mxu0 0.0
  %767 = vmatprep.subr.mxu0 0.0
  %768 = vmatpush1.msra.mxu0 0.0
  %769 = vmatprep.subr.mxu0 0.0
  %770 = vmatpush1.msra.mxu0 0.0
  %771 = vmatprep.subr.mxu0 0.0
  %772 = vmatpush1.msra.mxu0 0.0
  %773 = vmatprep.subr.mxu0 0.0
  %774 = vmatpush1.msra.mxu0 0.0
  %775 = vmatprep.subr.mxu0 0.0
  %776 = vmatpush1.msra.mxu0 0.0
  %777 = vmatprep.subr.mxu0 0.0
  %778 = vmatpush1.msra.mxu0 0.0
  %779 = vmatprep.subr.mxu0 0.0
  %780 = vmatpush1.msra.mxu0 0.0
  %781 = vmatprep.subr.mxu0 0.0
  %782 = vmatpush1.msra.mxu0 0.0
  %783 = vmatprep.subr.mxu0 0.0
  %784 = vmatpush1.msra.mxu0 0.0
  %785 = vmatprep.subr.mxu0 0.0
  %786 = vmatpush1.msra.mxu0 0.0
  %787 = vmatprep.subr.mxu0 0.0
  %788 = vmatpush1.msra.mxu0 0.0
  %789 = vmatprep.subr.mxu0 0.0
  %790 = vmatpush1.msra.mxu0 0.0
  %791 = vmatprep.subr.mxu0 0.0
  %792 = vmatpush1.msra.mxu0 0.0
  %793 = vmatprep.subr.mxu0 0.0
  %794 = vmatpush1.msra.mxu0 0.0
  %795 = vmatprep.subr.mxu0 0.0
  %796 = vmatpush1.msra.mxu0 0.0
  %797 = vmatprep.subr.mxu0 0.0
  %798 = vmatpush1.msra.mxu0 0.0
  %799 = vmatprep.subr.mxu0 0.0
  %800 = vmatpush1.msra.mxu0 0.0
  %801 = vmatprep.subr.mxu0 0.0
  %802 = vmatpush1.msra.mxu0 0.0
  %803 = vmatprep.subr.mxu0 0.0
  %804 = vmatpush1.msra.mxu0 0.0
  %805 = vmatprep.subr.mxu0 0.0
  %806 = vmatpush1.msra.mxu0 0.0
  %807 = vmatprep.subr.mxu0 0.0
  %808 = vmatpush1.msra.mxu0 0.0
  %809 = vmatprep.mubr.f32.mxu0 0.0
  %810 = vmatmul.mubr.f32.gmra.mrb[0].mxu0 %v743
  %v811 = vpop.f32.mrb[0].mxu0
  %v812 = vadd.f32 0.0, %v811
  %v813 = vpop.f32.mrb[0].mxu0
  %814 = vdwg.mxu0
  %v815 = vadd.f32 %v741, %v812
  %v816 = vtanh.pop %v815
  %817 = vst.msk [vmem:[%s740] sm:$0xff] %vm186, %v816
  %v818 = vld [vmem:[%s4] sm:$0xff]
  %v819 = vld [vmem:[%s4 + $0x8] sm:$0xff]
  %v820 = vld [vmem:[%s4 + $0x10] sm:$0xff]
  %v821 = vld [vmem:[%s4 + $0x18] sm:$0xff]
  %v822 = vld [vmem:[%s5] sm:$0xff]
  %v823 = vld [vmem:[%s5 + $0x8] sm:$0xff]
  %v824 = vld [vmem:[%s5 + $0x10] sm:$0xff]
  %v825 = vld [vmem:[%s5 + $0x18] sm:$0xff]
  %v826 = vld [vmem:[%s6] sm:$0x1]
  %v827 = vld [vmem:[#allocation2] sm:$0xff]
  %v828 = vld [vmem:[#allocation2 + $0x8] sm:$0xff]
  %v829 = vld [vmem:[#allocation2 + $0x10] sm:$0xff]
  %v830 = vld [vmem:[#allocation2 + $0x18] sm:$0xff]
  %v831 = vld [vmem:[#allocation2 + $0x20] sm:$0xff]
  %v832 = vld [vmem:[#allocation2 + $0x28] sm:$0xff]
  %v833 = vld [vmem:[#allocation2 + $0x30] sm:$0xff]
  %v834 = vld [vmem:[#allocation2 + $0x38] sm:$0xff]
  %v836 = vlaneseq
  %v837 = vshrl.u32 %v836, 7
  %v838 = vsub.s32 0, %v837
  %v839 = vrot.slane %v826, %v838
  %v842 = vsel %vm186, %v827, 0
  %v845 = vsel %vm186, %v828, 0
  %v848 = vsel %vm186, %v829, 0
  %v851 = vsel %vm186, %v830, 0
  %v854 = vsel %vm186, %v831, 0
  %v857 = vsel %vm186, %v832, 0
  %v860 = vsel %vm186, %v833, 0
  %v863 = vsel %vm186, %v834, 0
  %865 = vmatprep.subr.mxu0 0.0
  %866 = vmatpush1.msra.mxu0 %v818
  %867 = vmatprep.subr.mxu0 0.0
  %868 = vmatpush1.msra.mxu0 %v819
  %869 = vmatprep.subr.mxu0 0.0
  %870 = vmatpush1.msra.mxu0 %v820
  %871 = vmatprep.subr.mxu0 0.0
  %872 = vmatpush1.msra.mxu0 %v821
  %873 = vmatprep.subr.mxu0 0.0
  %874 = vmatpush1.msra.mxu0 0.0
  %875 = vmatprep.subr.mxu0 0.0
  %876 = vmatpush1.msra.mxu0 0.0
  %877 = vmatprep.subr.mxu0 0.0
  %878 = vmatpush1.msra.mxu0 0.0
  %879 = vmatprep.subr.mxu0 0.0
  %880 = vmatpush1.msra.mxu0 0.0
  %881 = vmatprep.subr.mxu0 0.0
  %882 = vmatpush1.msra.mxu0 0.0
  %883 = vmatprep.subr.mxu0 0.0
  %884 = vmatpush1.msra.mxu0 0.0
  %885 = vmatprep.subr.mxu0 0.0
  %886 = vmatpush1.msra.mxu0 0.0
  %887 = vmatprep.subr.mxu0 0.0
  %888 = vmatpush1.msra.mxu0 0.0
  %889 = vmatprep.subr.mxu0 0.0
  %890 = vmatpush1.msra.mxu0 0.0
  %891 = vmatprep.subr.mxu0 0.0
  %892 = vmatpush1.msra.mxu0 0.0
  %893 = vmatprep.subr.mxu0 0.0
  %894 = vmatpush1.msra.mxu0 0.0
  %895 = vmatprep.subr.mxu0 0.0
  %896 = vmatpush1.msra.mxu0 0.0
  %897 = vmatprep.subr.mxu0 0.0
  %898 = vmatpush1.msra.mxu0 0.0
  %899 = vmatprep.subr.mxu0 0.0
  %900 = vmatpush1.msra.mxu0 0.0
  %901 = vmatprep.subr.mxu0 0.0
  %902 = vmatpush1.msra.mxu0 0.0
  %903 = vmatprep.subr.mxu0 0.0
  %904 = vmatpush1.msra.mxu0 0.0
  %905 = vmatprep.subr.mxu0 0.0
  %906 = vmatpush1.msra.mxu0 0.0
  %907 = vmatprep.subr.mxu0 0.0
  %908 = vmatpush1.msra.mxu0 0.0
  %909 = vmatprep.subr.mxu0 0.0
  %910 = vmatpush1.msra.mxu0 0.0
  %911 = vmatprep.subr.mxu0 0.0
  %912 = vmatpush1.msra.mxu0 0.0
  %913 = vmatprep.subr.mxu0 0.0
  %914 = vmatpush1.msra.mxu0 0.0
  %915 = vmatprep.subr.mxu0 0.0
  %916 = vmatpush1.msra.mxu0 0.0
  %917 = vmatprep.subr.mxu0 0.0
  %918 = vmatpush1.msra.mxu0 0.0
  %919 = vmatprep.subr.mxu0 0.0
  %920 = vmatpush1.msra.mxu0 0.0
  %921 = vmatprep.subr.mxu0 0.0
  %922 = vmatpush1.msra.mxu0 0.0
  %923 = vmatprep.subr.mxu0 0.0
  %924 = vmatpush1.msra.mxu0 0.0
  %925 = vmatprep.subr.mxu0 0.0
  %926 = vmatpush1.msra.mxu0 0.0
  %927 = vmatprep.subr.mxu0 0.0
  %928 = vmatpush1.msra.mxu0 0.0
  %929 = vmatprep.mubr.f32.mxu0 0.0
  %930 = vmatmul.mubr.f32.gmra.mrb[0].mxu0 %v842
  %v931 = vpop.f32.mrb[0].mxu0
  %v932 = vadd.f32 %v839, %v931
  %v933 = vpop.f32.mrb[0].mxu0
  %934 = vmatprep.mubr.f32.mxu0 0.0
  %935 = vmatmul.mubr.f32.gmra.mrb[0].mxu0 %v845
  %v936 = vpop.f32.mrb[0].mxu0
  %v937 = vadd.f32 %v839, %v936
  %v938 = vpop.f32.mrb[0].mxu0
  %939 = vmatprep.mubr.f32.mxu0 0.0
  %940 = vmatmul.mubr.f32.gmra.mrb[0].mxu0 %v848
  %v941 = vpop.f32.mrb[0].mxu0
  %v942 = vadd.f32 %v839, %v941
  %v943 = vpop.f32.mrb[0].mxu0
  %944 = vmatprep.mubr.f32.mxu0 0.0
  %945 = vmatmul.mubr.f32.gmra.mrb[0].mxu0 %v851
  %v946 = vpop.f32.mrb[0].mxu0
  %v947 = vadd.f32 %v839, %v946
  %v948 = vpop.f32.mrb[0].mxu0
  %949 = vmatprep.mubr.f32.mxu0 0.0
  %950 = vmatmul.mubr.f32.gmra.mrb[0].mxu0 %v854
  %v951 = vpop.f32.mrb[0].mxu0
  %v952 = vadd.f32 %v839, %v951
  %v953 = vpop.f32.mrb[0].mxu0
  %954 = vmatprep.mubr.f32.mxu0 0.0
  %955 = vmatmul.mubr.f32.gmra.mrb[0].mxu0 %v857
  %v956 = vpop.f32.mrb[0].mxu0
  %v957 = vadd.f32 %v839, %v956
  %v958 = vpop.f32.mrb[0].mxu0
  %959 = vmatprep.mubr.f32.mxu0 0.0
  %960 = vmatmul.mubr.f32.gmra.mrb[0].mxu0 %v860
  %v961 = vpop.f32.mrb[0].mxu0
  %v962 = vadd.f32 %v839, %v961
  %v963 = vpop.f32.mrb[0].mxu0
  %964 = vmatprep.mubr.f32.mxu0 0.0
  %965 = vmatmul.mubr.f32.gmra.mrb[0].mxu0 %v863
  %v966 = vpop.f32.mrb[0].mxu0
  %v967 = vadd.f32 %v839, %v966
  %v968 = vpop.f32.mrb[0].mxu0
  %969 = vdwg.mxu0
  %970 = vst.msk [vmem:[#allocation2] sm:$0xff] %vm186, %v932
  %971 = vst.msk [vmem:[#allocation2 + $0x8] sm:$0xff] %vm186, %v937
  %972 = vst.msk [vmem:[#allocation2 + $0x10] sm:$0xff] %vm186, %v942
  %973 = vst.msk [vmem:[#allocation2 + $0x18] sm:$0xff] %vm186, %v947
  %974 = vst.msk [vmem:[#allocation2 + $0x20] sm:$0xff] %vm186, %v952
  %975 = vst.msk [vmem:[#allocation2 + $0x28] sm:$0xff] %vm186, %v957
  %976 = vst.msk [vmem:[#allocation2 + $0x30] sm:$0xff] %vm186, %v962
  %977 = vst.msk [vmem:[#allocation2 + $0x38] sm:$0xff] %vm186, %v967
  %v978 = vld [vmem:[#allocation2] sm:$0xff]
  %979 = vmatprep.subr.mxu0 0.0
  %980 = vmatpush1.msra.mxu0 %v822
  %981 = vmatprep.subr.mxu0 0.0
  %982 = vmatpush1.msra.mxu0 %v823
  %983 = vmatprep.subr.mxu0 0.0
  %984 = vmatpush1.msra.mxu0 %v824
  %985 = vmatprep.subr.mxu0 0.0
  %986 = vmatpush1.msra.mxu0 %v825
  %987 = vmatprep.subr.mxu0 0.0
  %988 = vmatpush1.msra.mxu0 0.0
  %989 = vmatprep.subr.mxu0 0.0
  %990 = vmatpush1.msra.mxu0 0.0
  %991 = vmatprep.subr.mxu0 0.0
  %992 = vmatpush1.msra.mxu0 0.0
  %993 = vmatprep.subr.mxu0 0.0
  %994 = vmatpush1.msra.mxu0 0.0
  %995 = vmatprep.subr.mxu0 0.0
  %996 = vmatpush1.msra.mxu0 0.0
  %997 = vmatprep.subr.mxu0 0.0
  %998 = vmatpush1.msra.mxu0 0.0
  %999 = vmatprep.subr.mxu0 0.0
  %1000 = vmatpush1.msra.mxu0 0.0
  %1001 = vmatprep.subr.mxu0 0.0
  %1002 = vmatpush1.msra.mxu0 0.0
  %1003 = vmatprep.subr.mxu0 0.0
  %1004 = vmatpush1.msra.mxu0 0.0
  %1005 = vmatprep.subr.mxu0 0.0
  %1006 = vmatpush1.msra.mxu0 0.0
  %1007 = vmatprep.subr.mxu0 0.0
  %1008 = vmatpush1.msra.mxu0 0.0
  %1009 = vmatprep.subr.mxu0 0.0
  %1010 = vmatpush1.msra.mxu0 0.0
  %1011 = vmatprep.subr.mxu0 0.0
  %1012 = vmatpush1.msra.mxu0 0.0
  %1013 = vmatprep.subr.mxu0 0.0
  %1014 = vmatpush1.msra.mxu0 0.0
  %1015 = vmatprep.subr.mxu0 0.0
  %1016 = vmatpush1.msra.mxu0 0.0
  %1017 = vmatprep.subr.mxu0 0.0
  %1018 = vmatpush1.msra.mxu0 0.0
  %1019 = vmatprep.subr.mxu0 0.0
  %1020 = vmatpush1.msra.mxu0 0.0
  %1021 = vmatprep.subr.mxu0 0.0
  %1022 = vmatpush1.msra.mxu0 0.0
  %1023 = vmatprep.subr.mxu0 0.0
  %1024 = vmatpush1.msra.mxu0 0.0
  %1025 = vmatprep.subr.mxu0 0.0
  %1026 = vmatpush1.msra.mxu0 0.0
  %1027 = vmatprep.subr.mxu0 0.0
  %1028 = vmatpush1.msra.mxu0 0.0
  %1029 = vmatprep.subr.mxu0 0.0
  %1030 = vmatpush1.msra.mxu0 0.0
  %1031 = vmatprep.subr.mxu0 0.0
  %1032 = vmatpush1.msra.mxu0 0.0
  %1033 = vmatprep.subr.mxu0 0.0
  %1034 = vmatpush1.msra.mxu0 0.0
  %1035 = vmatprep.subr.mxu0 0.0
  %1036 = vmatpush1.msra.mxu0 0.0
  %1037 = vmatprep.subr.mxu0 0.0
  %1038 = vmatpush1.msra.mxu0 0.0
  %1039 = vmatprep.subr.mxu0 0.0
  %1040 = vmatpush1.msra.mxu0 0.0
  %1041 = vmatprep.subr.mxu0 0.0
  %1042 = vmatpush1.msra.mxu0 0.0
  %1043 = vmatprep.mubr.f32.mxu0 0.0
  %1044 = vmatmul.mubr.f32.gmra.mrb[0].mxu0 %v197
  %v1045 = vpop.f32.mrb[0].mxu0
  %v1046 = vadd.f32 0.0, %v1045
  %v1047 = vpop.f32.mrb[0].mxu0
  %1048 = vdwg.mxu0
  %v1049 = vadd.f32 %v978, %v1046
  %v1050 = vtanh.pop %v1049
  %v1051 = vld [vmem:[%s272] sm:$0xff]
  %v1053 = vsel %vm186, %v1050, 0
  %1055 = vmatprep.subr.mxu0 0.0
  %1056 = vmatpush1.msra.mxu0 %v822
  %1057 = vmatprep.subr.mxu0 0.0
  %1058 = vmatpush1.msra.mxu0 %v823
  %1059 = vmatprep.subr.mxu0 0.0
  %1060 = vmatpush1.msra.mxu0 %v824
  %1061 = vmatprep.subr.mxu0 0.0
  %1062 = vmatpush1.msra.mxu0 %v825
  %1063 = vmatprep.subr.mxu0 0.0
  %1064 = vmatpush1.msra.mxu0 0.0
  %1065 = vmatprep.subr.mxu0 0.0
  %1066 = vmatpush1.msra.mxu0 0.0
  %1067 = vmatprep.subr.mxu0 0.0
  %1068 = vmatpush1.msra.mxu0 0.0
  %1069 = vmatprep.subr.mxu0 0.0
  %1070 = vmatpush1.msra.mxu0 0.0
  %1071 = vmatprep.subr.mxu0 0.0
  %1072 = vmatpush1.msra.mxu0 0.0
  %1073 = vmatprep.subr.mxu0 0.0
  %1074 = vmatpush1.msra.mxu0 0.0
  %1075 = vmatprep.subr.mxu0 0.0
  %1076 = vmatpush1.msra.mxu0 0.0
  %1077 = vmatprep.subr.mxu0 0.0
  %1078 = vmatpush1.msra.mxu0 0.0
  %1079 = vmatprep.subr.mxu0 0.0
  %1080 = vmatpush1.msra.mxu0 0.0
  %1081 = vmatprep.subr.mxu0 0.0
  %1082 = vmatpush1.msra.mxu0 0.0
  %1083 = vmatprep.subr.mxu0 0.0
  %1084 = vmatpush1.msra.mxu0 0.0
  %1085 = vmatprep.subr.mxu0 0.0
  %1086 = vmatpush1.msra.mxu0 0.0
  %1087 = vmatprep.subr.mxu0 0.0
  %1088 = vmatpush1.msra.mxu0 0.0
  %1089 = vmatprep.subr.mxu0 0.0
  %1090 = vmatpush1.msra.mxu0 0.0
  %1091 = vmatprep.subr.mxu0 0.0
  %1092 = vmatpush1.msra.mxu0 0.0
  %1093 = vmatprep.subr.mxu0 0.0
  %1094 = vmatpush1.msra.mxu0 0.0
  %1095 = vmatprep.subr.mxu0 0.0
  %1096 = vmatpush1.msra.mxu0 0.0
  %1097 = vmatprep.subr.mxu0 0.0
  %1098 = vmatpush1.msra.mxu0 0.0
  %1099 = vmatprep.subr.mxu0 0.0
  %1100 = vmatpush1.msra.mxu0 0.0
  %1101 = vmatprep.subr.mxu0 0.0
  %1102 = vmatpush1.msra.mxu0 0.0
  %1103 = vmatprep.subr.mxu0 0.0
  %1104 = vmatpush1.msra.mxu0 0.0
  %1105 = vmatprep.subr.mxu0 0.0
  %1106 = vmatpush1.msra.mxu0 0.0
  %1107 = vmatprep.subr.mxu0 0.0
  %1108 = vmatpush1.msra.mxu0 0.0
  %1109 = vmatprep.subr.mxu0 0.0
  %1110 = vmatpush1.msra.mxu0 0.0
  %1111 = vmatprep.subr.mxu0 0.0
  %1112 = vmatpush1.msra.mxu0 0.0
  %1113 = vmatprep.subr.mxu0 0.0
  %1114 = vmatpush1.msra.mxu0 0.0
  %1115 = vmatprep.subr.mxu0 0.0
  %1116 = vmatpush1.msra.mxu0 0.0
  %1117 = vmatprep.subr.mxu0 0.0
  %1118 = vmatpush1.msra.mxu0 0.0
  %1119 = vmatprep.mubr.f32.mxu0 0.0
  %1120 = vmatmul.mubr.f32.gmra.mrb[0].mxu0 %v1053
  %v1121 = vpop.f32.mrb[0].mxu0
  %v1122 = vadd.f32 0.0, %v1121
  %v1123 = vpop.f32.mrb[0].mxu0
  %1124 = vdwg.mxu0
  %v1125 = vadd.f32 %v1051, %v1122
  %v1126 = vtanh.pop %v1125
  %v1127 = vld [vmem:[%s350] sm:$0xff]
  %v1129 = vsel %vm186, %v1126, 0
  %1131 = vmatprep.subr.mxu0 0.0
  %1132 = vmatpush1.msra.mxu0 %v822
  %1133 = vmatprep.subr.mxu0 0.0
  %1134 = vmatpush1.msra.mxu0 %v823
  %1135 = vmatprep.subr.mxu0 0.0
  %1136 = vmatpush1.msra.mxu0 %v824
  %1137 = vmatprep.subr.mxu0 0.0
  %1138 = vmatpush1.msra.mxu0 %v825
  %1139 = vmatprep.subr.mxu0 0.0
  %1140 = vmatpush1.msra.mxu0 0.0
  %1141 = vmatprep.subr.mxu0 0.0
  %1142 = vmatpush1.msra.mxu0 0.0
  %1143 = vmatprep.subr.mxu0 0.0
  %1144 = vmatpush1.msra.mxu0 0.0
  %1145 = vmatprep.subr.mxu0 0.0
  %1146 = vmatpush1.msra.mxu0 0.0
  %1147 = vmatprep.subr.mxu0 0.0
  %1148 = vmatpush1.msra.mxu0 0.0
  %1149 = vmatprep.subr.mxu0 0.0
  %1150 = vmatpush1.msra.mxu0 0.0
  %1151 = vmatprep.subr.mxu0 0.0
  %1152 = vmatpush1.msra.mxu0 0.0
  %1153 = vmatprep.subr.mxu0 0.0
  %1154 = vmatpush1.msra.mxu0 0.0
  %1155 = vmatprep.subr.mxu0 0.0
  %1156 = vmatpush1.msra.mxu0 0.0
  %1157 = vmatprep.subr.mxu0 0.0
  %1158 = vmatpush1.msra.mxu0 0.0
  %1159 = vmatprep.subr.mxu0 0.0
  %1160 = vmatpush1.msra.mxu0 0.0
  %1161 = vmatprep.subr.mxu0 0.0
  %1162 = vmatpush1.msra.mxu0 0.0
  %1163 = vmatprep.subr.mxu0 0.0
  %1164 = vmatpush1.msra.mxu0 0.0
  %1165 = vmatprep.subr.mxu0 0.0
  %1166 = vmatpush1.msra.mxu0 0.0
  %1167 = vmatprep.subr.mxu0 0.0
  %1168 = vmatpush1.msra.mxu0 0.0
  %1169 = vmatprep.subr.mxu0 0.0
  %1170 = vmatpush1.msra.mxu0 0.0
  %1171 = vmatprep.subr.mxu0 0.0
  %1172 = vmatpush1.msra.mxu0 0.0
  %1173 = vmatprep.subr.mxu0 0.0
  %1174 = vmatpush1.msra.mxu0 0.0
  %1175 = vmatprep.subr.mxu0 0.0
  %1176 = vmatpush1.msra.mxu0 0.0
  %1177 = vmatprep.subr.mxu0 0.0
  %1178 = vmatpush1.msra.mxu0 0.0
  %1179 = vmatprep.subr.mxu0 0.0
  %1180 = vmatpush1.msra.mxu0 0.0
  %1181 = vmatprep.subr.mxu0 0.0
  %1182 = vmatpush1.msra.mxu0 0.0
  %1183 = vmatprep.subr.mxu0 0.0
  %1184 = vmatpush1.msra.mxu0 0.0
  %1185 = vmatprep.subr.mxu0 0.0
  %1186 = vmatpush1.msra.mxu0 0.0
  %1187 = vmatprep.subr.mxu0 0.0
  %1188 = vmatpush1.msra.mxu0 0.0
  %1189 = vmatprep.subr.mxu0 0.0
  %1190 = vmatpush1.msra.mxu0 0.0
  %1191 = vmatprep.subr.mxu0 0.0
  %1192 = vmatpush1.msra.mxu0 0.0
  %1193 = vmatprep.subr.mxu0 0.0
  %1194 = vmatpush1.msra.mxu0 0.0
  %1195 = vmatprep.mubr.f32.mxu0 0.0
  %1196 = vmatmul.mubr.f32.gmra.mrb[0].mxu0 %v1129
  %v1197 = vpop.f32.mrb[0].mxu0
  %v1198 = vadd.f32 0.0, %v1197
  %v1199 = vpop.f32.mrb[0].mxu0
  %1200 = vdwg.mxu0
  %v1201 = vadd.f32 %v1127, %v1198
  %v1202 = vtanh.pop %v1201
  %v1203 = vld [vmem:[%s428] sm:$0xff]
  %v1205 = vsel %vm186, %v1202, 0
  %1207 = vmatprep.subr.mxu0 0.0
  %1208 = vmatpush1.msra.mxu0 %v822
  %1209 = vmatprep.subr.mxu0 0.0
  %1210 = vmatpush1.msra.mxu0 %v823
  %1211 = vmatprep.subr.mxu0 0.0
  %1212 = vmatpush1.msra.mxu0 %v824
  %1213 = vmatprep.subr.mxu0 0.0
  %1214 = vmatpush1.msra.mxu0 %v825
  %1215 = vmatprep.subr.mxu0 0.0
  %1216 = vmatpush1.msra.mxu0 0.0
  %1217 = vmatprep.subr.mxu0 0.0
  %1218 = vmatpush1.msra.mxu0 0.0
  %1219 = vmatprep.subr.mxu0 0.0
  %1220 = vmatpush1.msra.mxu0 0.0
  %1221 = vmatprep.subr.mxu0 0.0
  %1222 = vmatpush1.msra.mxu0 0.0
  %1223 = vmatprep.subr.mxu0 0.0
  %1224 = vmatpush1.msra.mxu0 0.0
  %1225 = vmatprep.subr.mxu0 0.0
  %1226 = vmatpush1.msra.mxu0 0.0
  %1227 = vmatprep.subr.mxu0 0.0
  %1228 = vmatpush1.msra.mxu0 0.0
  %1229 = vmatprep.subr.mxu0 0.0
  %1230 = vmatpush1.msra.mxu0 0.0
  %1231 = vmatprep.subr.mxu0 0.0
  %1232 = vmatpush1.msra.mxu0 0.0
  %1233 = vmatprep.subr.mxu0 0.0
  %1234 = vmatpush1.msra.mxu0 0.0
  %1235 = vmatprep.subr.mxu0 0.0
  %1236 = vmatpush1.msra.mxu0 0.0
  %1237 = vmatprep.subr.mxu0 0.0
  %1238 = vmatpush1.msra.mxu0 0.0
  %1239 = vmatprep.subr.mxu0 0.0
  %1240 = vmatpush1.msra.mxu0 0.0
  %1241 = vmatprep.subr.mxu0 0.0
  %1242 = vmatpush1.msra.mxu0 0.0
  %1243 = vmatprep.subr.mxu0 0.0
  %1244 = vmatpush1.msra.mxu0 0.0
  %1245 = vmatprep.subr.mxu0 0.0
  %1246 = vmatpush1.msra.mxu0 0.0
  %1247 = vmatprep.subr.mxu0 0.0
  %1248 = vmatpush1.msra.mxu0 0.0
  %1249 = vmatprep.subr.mxu0 0.0
  %1250 = vmatpush1.msra.mxu0 0.0
  %1251 = vmatprep.subr.mxu0 0.0
  %1252 = vmatpush1.msra.mxu0 0.0
  %1253 = vmatprep.subr.mxu0 0.0
  %1254 = vmatpush1.msra.mxu0 0.0
  %1255 = vmatprep.subr.mxu0 0.0
  %1256 = vmatpush1.msra.mxu0 0.0
  %1257 = vmatprep.subr.mxu0 0.0
  %1258 = vmatpush1.msra.mxu0 0.0
  %1259 = vmatprep.subr.mxu0 0.0
  %1260 = vmatpush1.msra.mxu0 0.0
  %1261 = vmatprep.subr.mxu0 0.0
  %1262 = vmatpush1.msra.mxu0 0.0
  %1263 = vmatprep.subr.mxu0 0.0
  %1264 = vmatpush1.msra.mxu0 0.0
  %1265 = vmatprep.subr.mxu0 0.0
  %1266 = vmatpush1.msra.mxu0 0.0
  %1267 = vmatprep.subr.mxu0 0.0
  %1268 = vmatpush1.msra.mxu0 0.0
  %1269 = vmatprep.subr.mxu0 0.0
  %1270 = vmatpush1.msra.mxu0 0.0
  %1271 = vmatprep.mubr.f32.mxu0 0.0
  %1272 = vmatmul.mubr.f32.gmra.mrb[0].mxu0 %v1205
  %v1273 = vpop.f32.mrb[0].mxu0
  %v1274 = vadd.f32 0.0, %v1273
  %v1275 = vpop.f32.mrb[0].mxu0
  %1276 = vdwg.mxu0
  %v1277 = vadd.f32 %v1203, %v1274
  %v1278 = vtanh.pop %v1277
  %v1279 = vld [vmem:[%s506] sm:$0xff]
  %v1281 = vsel %vm186, %v1278, 0
  %1283 = vmatprep.subr.mxu0 0.0
  %1284 = vmatpush1.msra.mxu0 %v822
  %1285 = vmatprep.subr.mxu0 0.0
  %1286 = vmatpush1.msra.mxu0 %v823
  %1287 = vmatprep.subr.mxu0 0.0
  %1288 = vmatpush1.msra.mxu0 %v824
  %1289 = vmatprep.subr.mxu0 0.0
  %1290 = vmatpush1.msra.mxu0 %v825
  %1291 = vmatprep.subr.mxu0 0.0
  %1292 = vmatpush1.msra.mxu0 0.0
  %1293 = vmatprep.subr.mxu0 0.0
  %1294 = vmatpush1.msra.mxu0 0.0
  %1295 = vmatprep.subr.mxu0 0.0
  %1296 = vmatpush1.msra.mxu0 0.0
  %1297 = vmatprep.subr.mxu0 0.0
  %1298 = vmatpush1.msra.mxu0 0.0
  %1299 = vmatprep.subr.mxu0 0.0
  %1300 = vmatpush1.msra.mxu0 0.0
  %1301 = vmatprep.subr.mxu0 0.0
  %1302 = vmatpush1.msra.mxu0 0.0
  %1303 = vmatprep.subr.mxu0 0.0
  %1304 = vmatpush1.msra.mxu0 0.0
  %1305 = vmatprep.subr.mxu0 0.0
  %1306 = vmatpush1.msra.mxu0 0.0
  %1307 = vmatprep.subr.mxu0 0.0
  %1308 = vmatpush1.msra.mxu0 0.0
  %1309 = vmatprep.subr.mxu0 0.0
  %1310 = vmatpush1.msra.mxu0 0.0
  %1311 = vmatprep.subr.mxu0 0.0
  %1312 = vmatpush1.msra.mxu0 0.0
  %1313 = vmatprep.subr.mxu0 0.0
  %1314 = vmatpush1.msra.mxu0 0.0
  %1315 = vmatprep.subr.mxu0 0.0
  %1316 = vmatpush1.msra.mxu0 0.0
  %1317 = vmatprep.subr.mxu0 0.0
  %1318 = vmatpush1.msra.mxu0 0.0
  %1319 = vmatprep.subr.mxu0 0.0
  %1320 = vmatpush1.msra.mxu0 0.0
  %1321 = vmatprep.subr.mxu0 0.0
  %1322 = vmatpush1.msra.mxu0 0.0
  %1323 = vmatprep.subr.mxu0 0.0
  %1324 = vmatpush1.msra.mxu0 0.0
  %1325 = vmatprep.subr.mxu0 0.0
  %1326 = vmatpush1.msra.mxu0 0.0
  %1327 = vmatprep.subr.mxu0 0.0
  %1328 = vmatpush1.msra.mxu0 0.0
  %1329 = vmatprep.subr.mxu0 0.0
  %1330 = vmatpush1.msra.mxu0 0.0
  %1331 = vmatprep.subr.mxu0 0.0
  %1332 = vmatpush1.msra.mxu0 0.0
  %1333 = vmatprep.subr.mxu0 0.0
  %1334 = vmatpush1.msra.mxu0 0.0
  %1335 = vmatprep.subr.mxu0 0.0
  %1336 = vmatpush1.msra.mxu0 0.0
  %1337 = vmatprep.subr.mxu0 0.0
  %1338 = vmatpush1.msra.mxu0 0.0
  %1339 = vmatprep.subr.mxu0 0.0
  %1340 = vmatpush1.msra.mxu0 0.0
  %1341 = vmatprep.subr.mxu0 0.0
  %1342 = vmatpush1.msra.mxu0 0.0
  %1343 = vmatprep.subr.mxu0 0.0
  %1344 = vmatpush1.msra.mxu0 0.0
  %1345 = vmatprep.subr.mxu0 0.0
  %1346 = vmatpush1.msra.mxu0 0.0
  %1347 = vmatprep.mubr.f32.mxu0 0.0
  %1348 = vmatmul.mubr.f32.gmra.mrb[0].mxu0 %v1281
  %v1349 = vpop.f32.mrb[0].mxu0
  %v1350 = vadd.f32 0.0, %v1349
  %v1351 = vpop.f32.mrb[0].mxu0
  %1352 = vdwg.mxu0
  %v1353 = vadd.f32 %v1279, %v1350
  %v1354 = vtanh.pop %v1353
  %v1355 = vld [vmem:[%s584] sm:$0xff]
  %v1357 = vsel %vm186, %v1354, 0
  %1359 = vmatprep.subr.mxu0 0.0
  %1360 = vmatpush1.msra.mxu0 %v822
  %1361 = vmatprep.subr.mxu0 0.0
  %1362 = vmatpush1.msra.mxu0 %v823
  %1363 = vmatprep.subr.mxu0 0.0
  %1364 = vmatpush1.msra.mxu0 %v824
  %1365 = vmatprep.subr.mxu0 0.0
  %1366 = vmatpush1.msra.mxu0 %v825
  %1367 = vmatprep.subr.mxu0 0.0
  %1368 = vmatpush1.msra.mxu0 0.0
  %1369 = vmatprep.subr.mxu0 0.0
  %1370 = vmatpush1.msra.mxu0 0.0
  %1371 = vmatprep.subr.mxu0 0.0
  %1372 = vmatpush1.msra.mxu0 0.0
  %1373 = vmatprep.subr.mxu0 0.0
  %1374 = vmatpush1.msra.mxu0 0.0
  %1375 = vmatprep.subr.mxu0 0.0
  %1376 = vmatpush1.msra.mxu0 0.0
  %1377 = vmatprep.subr.mxu0 0.0
  %1378 = vmatpush1.msra.mxu0 0.0
  %1379 = vmatprep.subr.mxu0 0.0
  %1380 = vmatpush1.msra.mxu0 0.0
  %1381 = vmatprep.subr.mxu0 0.0
  %1382 = vmatpush1.msra.mxu0 0.0
  %1383 = vmatprep.subr.mxu0 0.0
  %1384 = vmatpush1.msra.mxu0 0.0
  %1385 = vmatprep.subr.mxu0 0.0
  %1386 = vmatpush1.msra.mxu0 0.0
  %1387 = vmatprep.subr.mxu0 0.0
  %1388 = vmatpush1.msra.mxu0 0.0
  %1389 = vmatprep.subr.mxu0 0.0
  %1390 = vmatpush1.msra.mxu0 0.0
  %1391 = vmatprep.subr.mxu0 0.0
  %1392 = vmatpush1.msra.mxu0 0.0
  %1393 = vmatprep.subr.mxu0 0.0
  %1394 = vmatpush1.msra.mxu0 0.0
  %1395 = vmatprep.subr.mxu0 0.0
  %1396 = vmatpush1.msra.mxu0 0.0
  %1397 = vmatprep.subr.mxu0 0.0
  %1398 = vmatpush1.msra.mxu0 0.0
  %1399 = vmatprep.subr.mxu0 0.0
  %1400 = vmatpush1.msra.mxu0 0.0
  %1401 = vmatprep.subr.mxu0 0.0
  %1402 = vmatpush1.msra.mxu0 0.0
  %1403 = vmatprep.subr.mxu0 0.0
  %1404 = vmatpush1.msra.mxu0 0.0
  %1405 = vmatprep.subr.mxu0 0.0
  %1406 = vmatpush1.msra.mxu0 0.0
  %1407 = vmatprep.subr.mxu0 0.0
  %1408 = vmatpush1.msra.mxu0 0.0
  %1409 = vmatprep.subr.mxu0 0.0
  %1410 = vmatpush1.msra.mxu0 0.0
  %1411 = vmatprep.subr.mxu0 0.0
  %1412 = vmatpush1.msra.mxu0 0.0
  %1413 = vmatprep.subr.mxu0 0.0
  %1414 = vmatpush1.msra.mxu0 0.0
  %1415 = vmatprep.subr.mxu0 0.0
  %1416 = vmatpush1.msra.mxu0 0.0
  %1417 = vmatprep.subr.mxu0 0.0
  %1418 = vmatpush1.msra.mxu0 0.0
  %1419 = vmatprep.subr.mxu0 0.0
  %1420 = vmatpush1.msra.mxu0 0.0
  %1421 = vmatprep.subr.mxu0 0.0
  %1422 = vmatpush1.msra.mxu0 0.0
  %1423 = vmatprep.mubr.f32.mxu0 0.0
  %1424 = vmatmul.mubr.f32.gmra.mrb[0].mxu0 %v1357
  %v1425 = vpop.f32.mrb[0].mxu0
  %v1426 = vadd.f32 0.0, %v1425
  %v1427 = vpop.f32.mrb[0].mxu0
  %1428 = vdwg.mxu0
  %v1429 = vadd.f32 %v1355, %v1426
  %v1430 = vtanh.pop %v1429
  %v1431 = vld [vmem:[%s662] sm:$0xff]
  %v1433 = vsel %vm186, %v1430, 0
  %1435 = vmatprep.subr.mxu0 0.0
  %1436 = vmatpush1.msra.mxu0 %v822
  %1437 = vmatprep.subr.mxu0 0.0
  %1438 = vmatpush1.msra.mxu0 %v823
  %1439 = vmatprep.subr.mxu0 0.0
  %1440 = vmatpush1.msra.mxu0 %v824
  %1441 = vmatprep.subr.mxu0 0.0
  %1442 = vmatpush1.msra.mxu0 %v825
  %1443 = vmatprep.subr.mxu0 0.0
  %1444 = vmatpush1.msra.mxu0 0.0
  %1445 = vmatprep.subr.mxu0 0.0
  %1446 = vmatpush1.msra.mxu0 0.0
  %1447 = vmatprep.subr.mxu0 0.0
  %1448 = vmatpush1.msra.mxu0 0.0
  %1449 = vmatprep.subr.mxu0 0.0
  %1450 = vmatpush1.msra.mxu0 0.0
  %1451 = vmatprep.subr.mxu0 0.0
  %1452 = vmatpush1.msra.mxu0 0.0
  %1453 = vmatprep.subr.mxu0 0.0
  %1454 = vmatpush1.msra.mxu0 0.0
  %1455 = vmatprep.subr.mxu0 0.0
  %1456 = vmatpush1.msra.mxu0 0.0
  %1457 = vmatprep.subr.mxu0 0.0
  %1458 = vmatpush1.msra.mxu0 0.0
  %1459 = vmatprep.subr.mxu0 0.0
  %1460 = vmatpush1.msra.mxu0 0.0
  %1461 = vmatprep.subr.mxu0 0.0
  %1462 = vmatpush1.msra.mxu0 0.0
  %1463 = vmatprep.subr.mxu0 0.0
  %1464 = vmatpush1.msra.mxu0 0.0
  %1465 = vmatprep.subr.mxu0 0.0
  %1466 = vmatpush1.msra.mxu0 0.0
  %1467 = vmatprep.subr.mxu0 0.0
  %1468 = vmatpush1.msra.mxu0 0.0
  %1469 = vmatprep.subr.mxu0 0.0
  %1470 = vmatpush1.msra.mxu0 0.0
  %1471 = vmatprep.subr.mxu0 0.0
  %1472 = vmatpush1.msra.mxu0 0.0
  %1473 = vmatprep.subr.mxu0 0.0
  %1474 = vmatpush1.msra.mxu0 0.0
  %1475 = vmatprep.subr.mxu0 0.0
  %1476 = vmatpush1.msra.mxu0 0.0
  %1477 = vmatprep.subr.mxu0 0.0
  %1478 = vmatpush1.msra.mxu0 0.0
  %1479 = vmatprep.subr.mxu0 0.0
  %1480 = vmatpush1.msra.mxu0 0.0
  %1481 = vmatprep.subr.mxu0 0.0
  %1482 = vmatpush1.msra.mxu0 0.0
  %1483 = vmatprep.subr.mxu0 0.0
  %1484 = vmatpush1.msra.mxu0 0.0
  %1485 = vmatprep.subr.mxu0 0.0
  %1486 = vmatpush1.msra.mxu0 0.0
  %1487 = vmatprep.subr.mxu0 0.0
  %1488 = vmatpush1.msra.mxu0 0.0
  %1489 = vmatprep.subr.mxu0 0.0
  %1490 = vmatpush1.msra.mxu0 0.0
  %1491 = vmatprep.subr.mxu0 0.0
  %1492 = vmatpush1.msra.mxu0 0.0
  %1493 = vmatprep.subr.mxu0 0.0
  %1494 = vmatpush1.msra.mxu0 0.0
  %1495 = vmatprep.subr.mxu0 0.0
  %1496 = vmatpush1.msra.mxu0 0.0
  %1497 = vmatprep.subr.mxu0 0.0
  %1498 = vmatpush1.msra.mxu0 0.0
  %1499 = vmatprep.mubr.f32.mxu0 0.0
  %1500 = vmatmul.mubr.f32.gmra.mrb[0].mxu0 %v1433
  %v1501 = vpop.f32.mrb[0].mxu0
  %v1502 = vadd.f32 0.0, %v1501
  %v1503 = vpop.f32.mrb[0].mxu0
  %1504 = vdwg.mxu0
  %v1505 = vadd.f32 %v1431, %v1502
  %v1506 = vtanh.pop %v1505
  %v1507 = vld [vmem:[%s740] sm:$0xff]
  %v1509 = vsel %vm186, %v1506, 0
  %1511 = vmatprep.subr.mxu0 0.0
  %1512 = vmatpush1.msra.mxu0 %v822
  %1513 = vmatprep.subr.mxu0 0.0
  %1514 = vmatpush1.msra.mxu0 %v823
  %1515 = vmatprep.subr.mxu0 0.0
  %1516 = vmatpush1.msra.mxu0 %v824
  %1517 = vmatprep.subr.mxu0 0.0
  %1518 = vmatpush1.msra.mxu0 %v825
  %1519 = vmatprep.subr.mxu0 0.0
  %1520 = vmatpush1.msra.mxu0 0.0
  %1521 = vmatprep.subr.mxu0 0.0
  %1522 = vmatpush1.msra.mxu0 0.0
  %1523 = vmatprep.subr.mxu0 0.0
  %1524 = vmatpush1.msra.mxu0 0.0
  %1525 = vmatprep.subr.mxu0 0.0
  %1526 = vmatpush1.msra.mxu0 0.0
  %1527 = vmatprep.subr.mxu0 0.0
  %1528 = vmatpush1.msra.mxu0 0.0
  %1529 = vmatprep.subr.mxu0 0.0
  %1530 = vmatpush1.msra.mxu0 0.0
  %1531 = vmatprep.subr.mxu0 0.0
  %1532 = vmatpush1.msra.mxu0 0.0
  %1533 = vmatprep.subr.mxu0 0.0
  %1534 = vmatpush1.msra.mxu0 0.0
  %1535 = vmatprep.subr.mxu0 0.0
  %1536 = vmatpush1.msra.mxu0 0.0
  %1537 = vmatprep.subr.mxu0 0.0
  %1538 = vmatpush1.msra.mxu0 0.0
  %1539 = vmatprep.subr.mxu0 0.0
  %1540 = vmatpush1.msra.mxu0 0.0
  %1541 = vmatprep.subr.mxu0 0.0
  %1542 = vmatpush1.msra.mxu0 0.0
  %1543 = vmatprep.subr.mxu0 0.0
  %1544 = vmatpush1.msra.mxu0 0.0
  %1545 = vmatprep.subr.mxu0 0.0
  %1546 = vmatpush1.msra.mxu0 0.0
  %1547 = vmatprep.subr.mxu0 0.0
  %1548 = vmatpush1.msra.mxu0 0.0
  %1549 = vmatprep.subr.mxu0 0.0
  %1550 = vmatpush1.msra.mxu0 0.0
  %1551 = vmatprep.subr.mxu0 0.0
  %1552 = vmatpush1.msra.mxu0 0.0
  %1553 = vmatprep.subr.mxu0 0.0
  %1554 = vmatpush1.msra.mxu0 0.0
  %1555 = vmatprep.subr.mxu0 0.0
  %1556 = vmatpush1.msra.mxu0 0.0
  %1557 = vmatprep.subr.mxu0 0.0
  %1558 = vmatpush1.msra.mxu0 0.0
  %1559 = vmatprep.subr.mxu0 0.0
  %1560 = vmatpush1.msra.mxu0 0.0
  %1561 = vmatprep.subr.mxu0 0.0
  %1562 = vmatpush1.msra.mxu0 0.0
  %1563 = vmatprep.subr.mxu0 0.0
  %1564 = vmatpush1.msra.mxu0 0.0
  %1565 = vmatprep.subr.mxu0 0.0
  %1566 = vmatpush1.msra.mxu0 0.0
  %1567 = vmatprep.subr.mxu0 0.0
  %1568 = vmatpush1.msra.mxu0 0.0
  %1569 = vmatprep.subr.mxu0 0.0
  %1570 = vmatpush1.msra.mxu0 0.0
  %1571 = vmatprep.subr.mxu0 0.0
  %1572 = vmatpush1.msra.mxu0 0.0
  %1573 = vmatprep.subr.mxu0 0.0
  %1574 = vmatpush1.msra.mxu0 0.0
  %1575 = vmatprep.mubr.f32.mxu0 0.0
  %1576 = vmatmul.mubr.f32.gmra.mrb[0].mxu0 %v1509
  %v1577 = vpop.f32.mrb[0].mxu0
  %v1578 = vadd.f32 0.0, %v1577
  %v1579 = vpop.f32.mrb[0].mxu0
  %1580 = vdwg.mxu0
  %v1581 = vadd.f32 %v1507, %v1578
  %v1582 = vtanh.pop %v1581
  %v1583 = vld [vmem:[%s7] sm:$0xff]
  %v1584 = vld [vmem:[%s7 + $0x8] sm:$0xff]
  %v1585 = vld [vmem:[%s7 + $0x10] sm:$0xff]
  %v1586 = vld [vmem:[%s7 + $0x18] sm:$0xff]
  %v1587 = vld [vmem:[%s8] sm:$0x1]
  %v1589 = vlaneseq
  %v1590 = vshrl.u32 %v1589, 7
  %v1591 = vsub.s32 0, %v1590
  %v1592 = vrot.slane %v1587, %v1591
  %v1595 = vsel %vm186, %v1582, 0
  %1597 = vmatprep.subr.mxu0 0.0
  %1598 = vmatpush1.msra.mxu0 %v1583
  %1599 = vmatprep.subr.mxu0 0.0
  %1600 = vmatpush1.msra.mxu0 %v1584
  %1601 = vmatprep.subr.mxu0 0.0
  %1602 = vmatpush1.msra.mxu0 %v1585
  %1603 = vmatprep.subr.mxu0 0.0
  %1604 = vmatpush1.msra.mxu0 %v1586
  %1605 = vmatprep.subr.mxu0 0.0
  %1606 = vmatpush1.msra.mxu0 0.0
  %1607 = vmatprep.subr.mxu0 0.0
  %1608 = vmatpush1.msra.mxu0 0.0
  %1609 = vmatprep.subr.mxu0 0.0
  %1610 = vmatpush1.msra.mxu0 0.0
  %1611 = vmatprep.subr.mxu0 0.0
  %1612 = vmatpush1.msra.mxu0 0.0
  %1613 = vmatprep.subr.mxu0 0.0
  %1614 = vmatpush1.msra.mxu0 0.0
  %1615 = vmatprep.subr.mxu0 0.0
  %1616 = vmatpush1.msra.mxu0 0.0
  %1617 = vmatprep.subr.mxu0 0.0
  %1618 = vmatpush1.msra.mxu0 0.0
  %1619 = vmatprep.subr.mxu0 0.0
  %1620 = vmatpush1.msra.mxu0 0.0
  %1621 = vmatprep.subr.mxu0 0.0
  %1622 = vmatpush1.msra.mxu0 0.0
  %1623 = vmatprep.subr.mxu0 0.0
  %1624 = vmatpush1.msra.mxu0 0.0
  %1625 = vmatprep.subr.mxu0 0.0
  %1626 = vmatpush1.msra.mxu0 0.0
  %1627 = vmatprep.subr.mxu0 0.0
  %1628 = vmatpush1.msra.mxu0 0.0
  %1629 = vmatprep.subr.mxu0 0.0
  %1630 = vmatpush1.msra.mxu0 0.0
  %1631 = vmatprep.subr.mxu0 0.0
  %1632 = vmatpush1.msra.mxu0 0.0
  %1633 = vmatprep.subr.mxu0 0.0
  %1634 = vmatpush1.msra.mxu0 0.0
  %1635 = vmatprep.subr.mxu0 0.0
  %1636 = vmatpush1.msra.mxu0 0.0
  %1637 = vmatprep.subr.mxu0 0.0
  %1638 = vmatpush1.msra.mxu0 0.0
  %1639 = vmatprep.subr.mxu0 0.0
  %1640 = vmatpush1.msra.mxu0 0.0
  %1641 = vmatprep.subr.mxu0 0.0
  %1642 = vmatpush1.msra.mxu0 0.0
  %1643 = vmatprep.subr.mxu0 0.0
  %1644 = vmatpush1.msra.mxu0 0.0
  %1645 = vmatprep.subr.mxu0 0.0
  %1646 = vmatpush1.msra.mxu0 0.0
  %1647 = vmatprep.subr.mxu0 0.0
  %1648 = vmatpush1.msra.mxu0 0.0
  %1649 = vmatprep.subr.mxu0 0.0
  %1650 = vmatpush1.msra.mxu0 0.0
  %1651 = vmatprep.subr.mxu0 0.0
  %1652 = vmatpush1.msra.mxu0 0.0
  %1653 = vmatprep.subr.mxu0 0.0
  %1654 = vmatpush1.msra.mxu0 0.0
  %1655 = vmatprep.subr.mxu0 0.0
  %1656 = vmatpush1.msra.mxu0 0.0
  %1657 = vmatprep.subr.mxu0 0.0
  %1658 = vmatpush1.msra.mxu0 0.0
  %1659 = vmatprep.subr.mxu0 0.0
  %1660 = vmatpush1.msra.mxu0 0.0
  %1661 = vmatprep.mubr.f32.mxu0 0.0
  %1662 = vmatmul.mubr.f32.gmra.mrb[0].mxu0 %v1595
  %v1663 = vpop.f32.mrb[0].mxu0
  %v1664 = vadd.f32 %v1592, %v1663
  %v1665 = vpop.f32.mrb[0].mxu0
  %1666 = vdwg.mxu0
  %1667 = vst [vmem:[%s9] sm:$0xff] %v1664
  // Predicated region
  $region38: #{rnn_forward.1} parent=0 // pred_check
    _
  $region39: #{rnn_forward.1} parent=0 // pred_check_branch
    %1669 = sbr.rel (0) target = $region41
  $region40: #{rnn_forward.1} parent=0 // pred_region
    _
  $region41: #{rnn_forward.1} parent=0 // pred_fallthru
    _
  // Predicated region
  $region42: #{rnn_forward.1} parent=0 // pred_check
    _
  $region43: #{rnn_forward.1} parent=0 // pred_check_branch
    %1671 = sbr.rel (0) target = $region45
  $region44: #{rnn_forward.1} parent=0 // pred_region
    _
  $region45: #{rnn_forward.1} parent=0 // pred_fallthru
    _

</llo_original>
